<compile_context>
chip_gen: v6e
topology: v6e:2x2x1
jax: 0.10.0
libtpu: 0.0.40
codegen_flags: <defaults>
</compile_context>

<pallas_src>
import functools

import jax
import jax.numpy as jnp
from jax.experimental import pallas as pl
from jax.experimental.pallas import tpu as pltpu

IN_DIM = 18
OUT_DIM = 18
PAD = 128                     # lane width / padded feature dim

# Original 8 (in, out) layer shapes implied by the module.
ENC_DIMS = [18, 32, 16, 8, 1]
DEC_DIMS = [1, 8, 16, 32, 18]
ORIG_IN_OUT = list(zip(ENC_DIMS[:-1], ENC_DIMS[1:])) + list(zip(DEC_DIMS[:-1], DEC_DIMS[1:]))
N_ORIG = len(ORIG_IN_OUT)     # 8

# After fusing the activation-free Linear(8,1) @ Linear(1,8) bottleneck -> 8x8.
FUSED_IN_OUT = ORIG_IN_OUT[:3] + [(8, 8)] + ORIG_IN_OUT[5:]
N_FUSED = len(FUSED_IN_OUT)   # 7

SLAB_ROWS = N_FUSED * PAD     # 896 rows x 128 lanes, one f32 VMEM slab (~448 KiB)

TILE_B = 256                  # batch tile: multiple of 256 (v6e/v7x MXU) and of 128 (v5e)


def autoencoder_kernel(x_ref, params_ref, out_ref):
    # x_ref: (TILE_B, 18)  params_ref: (896, 128)  out_ref: (TILE_B, 18)
    tb = x_ref.shape[0]
    x = x_ref[...]                                               # f32

    # Pad the feature axis to the 128-lane vreg width once; lane 127 carries a
    # constant 1.0 that drives the bias row folded into each weight block.
    h = jnp.concatenate([x, jnp.zeros((tb, PAD - IN_DIM), x.dtype)], axis=1)
    col = jax.lax.broadcasted_iota(jnp.int32, (tb, PAD), 1)
    h = jnp.where(col == PAD - 1, jnp.float32(1.0), h)

    for li in range(N_FUSED):                                    # unrolled, 7 layers
        w = params_ref[li * PAD:(li + 1) * PAD, :]               # (128,128) aligned slice
        h = jnp.dot(h, w, preferred_element_type=jnp.float32)    # Wx + b (bias folded in)
        if li != N_FUSED - 1:                                    # ReLU after all but last
            h = jnp.maximum(h, 0.0)                              # (relu keeps the 1-lane)

    out_ref[...] = h[:, :OUT_DIM].astype(out_ref.dtype)


def init_params(key):
    """PyTorch nn.Linear default init (U(-k, k), k=1/sqrt(fan_in)); W stored as (in, out)."""
    weights, biases = [], []
    for (fan_in, fan_out) in ORIG_IN_OUT:
        key, kw, kb = jax.random.split(key, 3)
        bound = 1.0 / jnp.sqrt(jnp.float32(fan_in))
        weights.append(jax.random.uniform(kw, (fan_in, fan_out), jnp.float32, -bound, bound))
        biases.append(jax.random.uniform(kb, (1, fan_out), jnp.float32, -bound, bound))
    return weights, biases


def fuse_and_pack(weights, biases):
    """Fuse layers 3&4 (no activation between them) and pack every layer into one
    lane-padded f32 slab.  Layer i occupies rows [i*128, (i+1)*128):
      rows [0, fan_in)        cols [0, fan_out)  = W_i
      row  127                cols [0, fan_out)  = b_i        (driven by the 1-lane)
      row  127                col  127           = 1.0        (keeps the 1-lane alive)
    """
    w34 = weights[3] @ weights[4]                 # (8,8)
    b34 = biases[3] @ weights[4] + biases[4]      # (1,8)
    fw = list(weights[:3]) + [w34] + list(weights[5:])
    fb = list(biases[:3]) + [b34] + list(biases[5:])

    slab = jnp.zeros((SLAB_ROWS, PAD), jnp.float32)
    for i, (w, b) in enumerate(zip(fw, fb)):
        fi, fo = w.shape
        r0 = i * PAD
        slab = slab.at[r0:r0 + fi, :fo].set(w)
        slab = slab.at[r0 + PAD - 1, :fo].set(b.reshape(-1))
        slab = slab.at[r0 + PAD - 1, PAD - 1].set(1.0)
    return slab


@functools.partial(jax.jit, static_argnames=("tile_b",))
def autoencoder_forward(x, param_slab, *, tile_b=TILE_B):
    B = x.shape[0]
    n_tiles = pl.cdiv(B, tile_b)
    b_pad = n_tiles * tile_b
    if b_pad != B:
        x = jnp.pad(x, ((0, b_pad - B), (0, 0)))

    out = pl.pallas_call(
        autoencoder_kernel,
        out_shape=jax.ShapeDtypeStruct((b_pad, OUT_DIM), x.dtype),
        grid=(n_tiles,),
        in_specs=[
            pl.BlockSpec((tile_b, IN_DIM), lambda i: (i, 0)),     # batch-tiled activations
            pl.BlockSpec((SLAB_ROWS, PAD), lambda i: (0, 0)),     # weight slab, VMEM-resident
        ],
        out_specs=pl.BlockSpec((tile_b, OUT_DIM), lambda i: (i, 0)),
        compiler_params=pltpu.CompilerParams(
            dimension_semantics=("parallel",),                    # megacore split on v7x
        ),
    )(x, param_slab)
    return out[:B]


def reference_forward(x, weights, biases):
    """Unfused 8-layer pure-JAX reference matching the PyTorch module exactly."""
    h = x.astype(jnp.float32)
    for li in range(N_ORIG):
        h = jnp.dot(h, weights[li], precision=jax.lax.Precision.HIGHEST) + biases[li]
        if li not in (3, 7):          # no ReLU after encoder output / final output
            h = jnp.maximum(h, 0.0)
    return h.astype(x.dtype)


if __name__ == "__main__":
    key = jax.random.PRNGKey(0)
    key, kx = jax.random.split(key)

    B = 300                           # small, non-multiple of TILE_B: exercises pad + 2 grid steps
    x = jax.random.normal(kx, (B, IN_DIM), jnp.float32)

    weights, biases = init_params(key)
    slab = fuse_and_pack(weights, biases)

    out = autoencoder_forward(x, slab)
    out = jax.block_until_ready(out)

    ref = reference_forward(x, weights, biases)
    assert out.shape == (B, OUT_DIM), out.shape
    err = float(jnp.max(jnp.abs(out - ref)))
    assert jnp.allclose(out, ref, atol=1e-3, rtol=1e-3), err

    print("KERNEL_OK")
</pallas_src>

<mosaic_0001>
module attributes {stable_mosaic.version = 11 : i64} {
  func.func @autoencoder_kernel(%arg0: i32, %arg1: memref<256x18xf32, #tpu.memory_space<vmem>>, %arg2: memref<896x128xf32, #tpu.memory_space<vmem>>, %arg3: memref<256x18xf32, #tpu.memory_space<vmem>>) attributes {dimension_semantics = [#tpu.dimension_semantics<parallel>], iteration_bounds = array<i64: 2>, scalar_prefetch = 0 : i64, scratch_operands = 0 : i64, tpu.core_type = #tpu.core_type<tc>, window_params = [{transform_indices = @transform_0, window_bounds = array<i64: 256, 18>}, {pipeline_mode = #tpu.pipeline_mode<synchronous>, transform_indices = @transform_1, window_bounds = array<i64: 896, 128>}, {transform_indices = @transform_2, window_bounds = array<i64: 256, 18>}]} {
    %c0 = arith.constant 0 : index
    %c0_0 = arith.constant 0 : index
    %0 = vector.load %arg1[%c0, %c0_0] : memref<256x18xf32, #tpu.memory_space<vmem>>, vector<256x18xf32>
    %cst = arith.constant 0.000000e+00 : f32
    %1 = vector.broadcast %cst : f32 to vector<256x110xf32>
    %2 = tpu.concatenate %0, %1 in 1 : vector<256x18xf32>, vector<256x110xf32> -> vector<256x128xf32>
    %3 = tpu.iota {dimensions = array<i32: 1>} : vector<256x128xi32>
    %c127_i32 = arith.constant 127 : i32
    %4 = vector.broadcast %c127_i32 : i32 to vector<256x128xi32>
    %5 = arith.cmpi eq, %3, %4 : vector<256x128xi32>
    %cst_1 = arith.constant 1.000000e+00 : f32
    %6 = vector.broadcast %cst_1 : f32 to vector<256x128xf32>
    %7 = arith.select %5, %6, %2 : vector<256x128xi1>, vector<256x128xf32>
    %c0_2 = arith.constant 0 : index
    %c0_3 = arith.constant 0 : index
    %8 = vector.load %arg2[%c0_2, %c0_3] : memref<896x128xf32, #tpu.memory_space<vmem>>, vector<128x128xf32>
    %cst_4 = arith.constant dense<0.000000e+00> : vector<256x128xf32>
    %9 = tpu.matmul %7, %8, %cst_4 {dimension_numbers = #tpu.dot_dimension_numbers<[1], [0], [0], [1], [0, 0, 1, 1], [], []>} : vector<256x128xf32>, vector<128x128xf32>, vector<256x128xf32> -> vector<256x128xf32>
    %cst_5 = arith.constant 0.000000e+00 : f32
    %10 = vector.broadcast %cst_5 : f32 to vector<256x128xf32>
    %11 = arith.maximumf %9, %10 : vector<256x128xf32>
    %c128 = arith.constant 128 : index
    %c0_6 = arith.constant 0 : index
    %12 = vector.load %arg2[%c128, %c0_6] : memref<896x128xf32, #tpu.memory_space<vmem>>, vector<128x128xf32>
    %cst_7 = arith.constant dense<0.000000e+00> : vector<256x128xf32>
    %13 = tpu.matmul %11, %12, %cst_7 {dimension_numbers = #tpu.dot_dimension_numbers<[1], [0], [0], [1], [0, 0, 1, 1], [], []>} : vector<256x128xf32>, vector<128x128xf32>, vector<256x128xf32> -> vector<256x128xf32>
    %cst_8 = arith.constant 0.000000e+00 : f32
    %14 = vector.broadcast %cst_8 : f32 to vector<256x128xf32>
    %15 = arith.maximumf %13, %14 : vector<256x128xf32>
    %c256 = arith.constant 256 : index
    %c0_9 = arith.constant 0 : index
    %16 = vector.load %arg2[%c256, %c0_9] : memref<896x128xf32, #tpu.memory_space<vmem>>, vector<128x128xf32>
    %cst_10 = arith.constant dense<0.000000e+00> : vector<256x128xf32>
    %17 = tpu.matmul %15, %16, %cst_10 {dimension_numbers = #tpu.dot_dimension_numbers<[1], [0], [0], [1], [0, 0, 1, 1], [], []>} : vector<256x128xf32>, vector<128x128xf32>, vector<256x128xf32> -> vector<256x128xf32>
    %cst_11 = arith.constant 0.000000e+00 : f32
    %18 = vector.broadcast %cst_11 : f32 to vector<256x128xf32>
    %19 = arith.maximumf %17, %18 : vector<256x128xf32>
    %c384 = arith.constant 384 : index
    %c0_12 = arith.constant 0 : index
    %20 = vector.load %arg2[%c384, %c0_12] : memref<896x128xf32, #tpu.memory_space<vmem>>, vector<128x128xf32>
    %cst_13 = arith.constant dense<0.000000e+00> : vector<256x128xf32>
    %21 = tpu.matmul %19, %20, %cst_13 {dimension_numbers = #tpu.dot_dimension_numbers<[1], [0], [0], [1], [0, 0, 1, 1], [], []>} : vector<256x128xf32>, vector<128x128xf32>, vector<256x128xf32> -> vector<256x128xf32>
    %cst_14 = arith.constant 0.000000e+00 : f32
    %22 = vector.broadcast %cst_14 : f32 to vector<256x128xf32>
    %23 = arith.maximumf %21, %22 : vector<256x128xf32>
    %c512 = arith.constant 512 : index
    %c0_15 = arith.constant 0 : index
    %24 = vector.load %arg2[%c512, %c0_15] : memref<896x128xf32, #tpu.memory_space<vmem>>, vector<128x128xf32>
    %cst_16 = arith.constant dense<0.000000e+00> : vector<256x128xf32>
    %25 = tpu.matmul %23, %24, %cst_16 {dimension_numbers = #tpu.dot_dimension_numbers<[1], [0], [0], [1], [0, 0, 1, 1], [], []>} : vector<256x128xf32>, vector<128x128xf32>, vector<256x128xf32> -> vector<256x128xf32>
    %cst_17 = arith.constant 0.000000e+00 : f32
    %26 = vector.broadcast %cst_17 : f32 to vector<256x128xf32>
    %27 = arith.maximumf %25, %26 : vector<256x128xf32>
    %c640 = arith.constant 640 : index
    %c0_18 = arith.constant 0 : index
    %28 = vector.load %arg2[%c640, %c0_18] : memref<896x128xf32, #tpu.memory_space<vmem>>, vector<128x128xf32>
    %cst_19 = arith.constant dense<0.000000e+00> : vector<256x128xf32>
    %29 = tpu.matmul %27, %28, %cst_19 {dimension_numbers = #tpu.dot_dimension_numbers<[1], [0], [0], [1], [0, 0, 1, 1], [], []>} : vector<256x128xf32>, vector<128x128xf32>, vector<256x128xf32> -> vector<256x128xf32>
    %cst_20 = arith.constant 0.000000e+00 : f32
    %30 = vector.broadcast %cst_20 : f32 to vector<256x128xf32>
    %31 = arith.maximumf %29, %30 : vector<256x128xf32>
    %c768 = arith.constant 768 : index
    %c0_21 = arith.constant 0 : index
    %32 = vector.load %arg2[%c768, %c0_21] : memref<896x128xf32, #tpu.memory_space<vmem>>, vector<128x128xf32>
    %cst_22 = arith.constant dense<0.000000e+00> : vector<256x128xf32>
    %33 = tpu.matmul %31, %32, %cst_22 {dimension_numbers = #tpu.dot_dimension_numbers<[1], [0], [0], [1], [0, 0, 1, 1], [], []>} : vector<256x128xf32>, vector<128x128xf32>, vector<256x128xf32> -> vector<256x128xf32>
    %34 = vector.extract_strided_slice %33 {offsets = [0, 0], sizes = [256, 18], strides = [1, 1]} : vector<256x128xf32> to vector<256x18xf32>
    %c0_23 = arith.constant 0 : index
    %c0_24 = arith.constant 0 : index
    %35 = vector.load %arg3[%c0_23, %c0_24] : memref<256x18xf32, #tpu.memory_space<vmem>>, vector<256x18xf32>
    tpu.vector_store %arg3[%c0_23, %c0_24], %34 {strides = array<i32>} : memref<256x18xf32, #tpu.memory_space<vmem>>, vector<256x18xf32>,
    return
  }
  func.func @transform_0(%arg0: i32) -> (i32, i32) {
    %c0_i32 = arith.constant 0 : i32
    %c0_i32_0 = arith.constant 0 : i32
    return %arg0, %c0_i32 : i32, i32
  }
  func.func @transform_1(%arg0: i32) -> (i32, i32) {
    %c0_i32 = arith.constant 0 : i32
    %c0_i32_0 = arith.constant 0 : i32
    %c0_i32_1 = arith.constant 0 : i32
    return %c0_i32, %c0_i32_0 : i32, i32
  }
  func.func @transform_2(%arg0: i32) -> (i32, i32) {
    %c0_i32 = arith.constant 0 : i32
    %c0_i32_0 = arith.constant 0 : i32
    return %arg0, %c0_i32 : i32, i32
  }
}

</mosaic_0001>

<llo_original>
// kernel: autoencoder_forward.1
$region0: #{autoencoder_forward.1}
  #allocation0 [shape = 'u32[]', space=smem, size = 0x4, offset = 0x4, fixed_abs, tag = 'smem constant byte address 0x4 - core index']
  #allocation1 [shape = 'u32[144,128]{1,0:T(1,128)}', space=vmem, size = 0x12000, scoped, tag = 'internal scratch']
  %s0 = inlined_call_operand.vmem [shape: f32[512,18], index: 0, kind: input, shape index: {}]
  %s1 = inlined_call_operand.vmem [shape: f32[896,128], index: 1, kind: input, shape index: {}]
  %s2 = inlined_call_operand.vmem [shape: f32[512,18], index: 2, kind: output, shape index: {}]
  %s3 = sld [smem:[#allocation0]]
  $region41: #{autoencoder_forward.1} parent=0
    _
  %s5 = ssub.s32 1, %s3
  %s6 = scalar_select 0, %s5, %s3
  loop: start=0, step=1, limit=4
  $region2: #{autoencoder_forward.1} parent=0 // loop_pre_header
    _
  $region3: #{autoencoder_forward.1} parent=0 // loop_header
    %s8 = sphi 0, %s12
    %p9 = scmp.ge.s32.totalorder %s8, 4
    %s18 = sphi 0, %s20
    %s21 = sphi 0, %s18
    %s22 = sphi 0, %s21
    %s38 = sphi 0, %s22
    %s42 = sphi 0, %s42
    %s44 = sphi 0, %s42
    %s45 = sphi 0, %s44
    %s59 = sphi 0, %s45
    %s65 = sphi 0, %s67
    %s68 = sphi 0, %s65
    %s69 = sphi 0, %s68
    %s85 = sphi 0, %s69
  $region4: #{autoencoder_forward.1} parent=0 // loop_header_branch
    %11 = sbr.rel (%p9) target = $region8
  $region5: #{autoencoder_forward.1} parent=0 // loop_body
    %s13 = ssub.s32 %s8, 1
    %s14 = ssub.s32 %s8, 2
    %s15 = sadd.s32 %s8, 1
    %s16 = ssub.s32 %s8, %s15
    %p17 = scmp.eq.s32.totalorder %s16, 0
    %s19 = sadd.s32 %s18, 1
    %s20 = scalar_select %p17, %s18, %s19
    %p23 = pneg %p17
    %p24 = scmp.eq.s32.totalorder %s8, 1
    %p25 = por %p23, %p24
    %p26 = scmp.ne.s32.totalorder %s18, %s21
    %p27 = scmp.eq.s32.totalorder %s8, 0
    %p28 = por %p26, %p27
    %p29 = scmp.ne.s32.totalorder %s18, %s21
    %p30 = scmp.eq.s32.totalorder %s13, 1
    %p31 = por %p29, %p30
    %p32 = scmp.ne.s32.totalorder %s21, %s22
    %p33 = scmp.eq.s32.totalorder %s13, 0
    %p34 = por %p32, %p33
    %p35 = scmp.ne.s32.totalorder %s21, %s22
    %p36 = scmp.eq.s32.totalorder %s14, 1
    %p37 = por %p35, %p36
    %p39 = scmp.ne.s32.totalorder %s22, %s38
    %p40 = scmp.eq.s32.totalorder %s14, 0
    %p41 = por %p39, %p40
    %s43 = sadd.s32 %s42, 1
    %p46 = scmp.eq.s32.totalorder %s8, 1
    %p47 = scmp.ne.s32.totalorder %s42, %s44
    %p48 = scmp.eq.s32.totalorder %s8, 0
    %p49 = por %p47, %p48
    %p50 = scmp.ne.s32.totalorder %s42, %s44
    %p51 = scmp.eq.s32.totalorder %s13, 1
    %p52 = por %p50, %p51
    %p53 = scmp.ne.s32.totalorder %s44, %s45
    %p54 = scmp.eq.s32.totalorder %s13, 0
    %p55 = por %p53, %p54
    %p56 = scmp.ne.s32.totalorder %s44, %s45
    %p57 = scmp.eq.s32.totalorder %s14, 1
    %p58 = por %p56, %p57
    %p60 = scmp.ne.s32.totalorder %s45, %s59
    %p61 = scmp.eq.s32.totalorder %s14, 0
    %p62 = por %p60, %p61
    %s63 = ssub.s32 %s8, %s15
    %p64 = scmp.eq.s32.totalorder %s63, 0
    %s66 = sadd.s32 %s65, 1
    %s67 = scalar_select %p64, %s65, %s66
    %p70 = pneg %p64
    %p71 = scmp.eq.s32.totalorder %s8, 1
    %p72 = por %p70, %p71
    %p73 = scmp.ne.s32.totalorder %s65, %s68
    %p74 = scmp.eq.s32.totalorder %s8, 0
    %p75 = por %p73, %p74
    %p76 = scmp.ne.s32.totalorder %s65, %s68
    %p77 = scmp.eq.s32.totalorder %s13, 1
    %p78 = por %p76, %p77
    %p79 = scmp.ne.s32.totalorder %s68, %s69
    %p80 = scmp.eq.s32.totalorder %s13, 0
    %p81 = por %p79, %p80
    %p82 = scmp.ne.s32.totalorder %s68, %s69
    %p83 = scmp.eq.s32.totalorder %s14, 1
    %p84 = por %p82, %p83
    %p86 = scmp.ne.s32.totalorder %s69, %s85
    %p87 = scmp.eq.s32.totalorder %s14, 0
    %p88 = por %p86, %p87
    %p89 = scmp.le.s32.totalorder 1, %s8
    %p90 = scmp.lt.s32.totalorder %s8, 3
    %p91 = pnand %p89, %p90
    %p92 = pneg %p91
    // Predicated region
    $region9: #{autoencoder_forward.1} parent=5 // pred_check
      _
    $region10: #{autoencoder_forward.1} parent=5 // pred_check_branch
      %94 = sbr.rel (%p91) target = $region12
    $region11: #{autoencoder_forward.1} parent=5 // pred_region
      %s95 = ssub.s32 %s8, 1
      // Predicated region
      $region13: #{autoencoder_forward.1} parent=11 // pred_check
        %p96 = pneg %p55
      $region14: #{autoencoder_forward.1} parent=11 // pred_check_branch
        %98 = sbr.rel (%p96) target = $region16
      $region15: #{autoencoder_forward.1} parent=11 // pred_region
        _
      $region16: #{autoencoder_forward.1} parent=11 // pred_fallthru
        _
    $region12: #{autoencoder_forward.1} parent=5 // pred_fallthru
      _
    %p99 = scmp.lt.s32.totalorder %s8, 2
    // Predicated region
    $region17: #{autoencoder_forward.1} parent=5 // pred_check
      %p100 = pneg %p99
    $region18: #{autoencoder_forward.1} parent=5 // pred_check_branch
      %102 = sbr.rel (%p100) target = $region20
    $region19: #{autoencoder_forward.1} parent=5 // pred_region
      // Predicated region
      $region21: #{autoencoder_forward.1} parent=19 // pred_check
        %p103 = pneg %p28
      $region22: #{autoencoder_forward.1} parent=19 // pred_check_branch
        %105 = sbr.rel (%p103) target = $region24
      $region23: #{autoencoder_forward.1} parent=19 // pred_region
        %s106 = smul.u32 32, %s8
        %p107 = scmp.lt.s32.totalorder %s106, 63
        %s108 = scalar_select %p107, %s106, 63
        %s109 = smul.addr %s108, 8
        %s110 = scalar_lea.vmem %s0, %s109
        %s111 = smul.u32 32, %s8
      $region24: #{autoencoder_forward.1} parent=19 // pred_fallthru
        _
    $region20: #{autoencoder_forward.1} parent=5 // pred_fallthru
      _
    %p112 = scmp.le.s32.totalorder 1, %s8
    %p113 = scmp.lt.s32.totalorder %s8, 3
    %p114 = pnand %p112, %p113
    %p115 = pneg %p114
    // Predicated region
    $region25: #{autoencoder_forward.1} parent=5 // pred_check
      _
    $region26: #{autoencoder_forward.1} parent=5 // pred_check_branch
      %117 = sbr.rel (%p114) target = $region28
    $region27: #{autoencoder_forward.1} parent=5 // pred_region
      %s118 = ssub.s32 %s8, 1
      %s119 = smul.u32 32, %s13
      %p120 = scmp.lt.s32.totalorder %s119, 63
      %s121 = scalar_select %p120, %s119, 63
      %s122 = smul.addr %s121, 8
      %s123 = scalar_lea.vmem %s0, %s122
      %p124 = pneg %p34
      %p125 = pneg %p31
      %p126 = pneg %p55
      %p127 = pneg %p52
      %p128 = pneg %p81
      %p129 = pneg %p78
      %s130 = smul.u32 32, %s13
      %p131 = scmp.lt.s32.totalorder %s130, 63
      %s132 = scalar_select %p131, %s130, 63
      %s133 = smul.addr %s132, 8
      %s134 = scalar_lea.vmem %s2, %s133
      %s135 = smul.u32 32, %s13
      %p136 = scmp.lt.s32.totalorder %s135, 63
      %s137 = scalar_select %p136, %s135, 63
      %s138 = smul.addr %s137, 8
      %s139 = scalar_lea.vmem %s0, %s138
      %s140 = smul.u32 32, %s13
      %s141 = smul.u32 32, %s13
      %p142 = scmp.lt.s32.totalorder %s141, 63
      %s143 = scalar_select %p142, %s141, 63
      %s144 = smul.addr %s143, 8
      %s145 = scalar_lea.vmem %s2, %s144
      %s146 = smul.u32 32, %s13
      %v147 = vld [vmem:[%s139] sm:$0xff]
      %v148 = vld [vmem:[%s139 + $0x8] sm:$0xff]
      %v149 = vld [vmem:[%s139 + $0x10] sm:$0xff]
      %v150 = vld [vmem:[%s139 + $0x18] sm:$0xff]
      %v151 = vld [vmem:[%s139 + $0x20] sm:$0xff]
      %v152 = vld [vmem:[%s139 + $0x28] sm:$0xff]
      %v153 = vld [vmem:[%s139 + $0x30] sm:$0xff]
      %v154 = vld [vmem:[%s139 + $0x38] sm:$0xff]
      %v155 = vld [vmem:[%s139 + $0x40] sm:$0xff]
      %v156 = vld [vmem:[%s139 + $0x48] sm:$0xff]
      %v157 = vld [vmem:[%s139 + $0x50] sm:$0xff]
      %v158 = vld [vmem:[%s139 + $0x58] sm:$0xff]
      %v159 = vld [vmem:[%s139 + $0x60] sm:$0xff]
      %v160 = vld [vmem:[%s139 + $0x68] sm:$0xff]
      %v161 = vld [vmem:[%s139 + $0x70] sm:$0xff]
      %v162 = vld [vmem:[%s139 + $0x78] sm:$0xff]
      %v163 = vld [vmem:[%s139 + $0x80] sm:$0xff]
      %v164 = vld [vmem:[%s139 + $0x88] sm:$0xff]
      %v165 = vld [vmem:[%s139 + $0x90] sm:$0xff]
      %v166 = vld [vmem:[%s139 + $0x98] sm:$0xff]
      %v167 = vld [vmem:[%s139 + $0xa0] sm:$0xff]
      %v168 = vld [vmem:[%s139 + $0xa8] sm:$0xff]
      %v169 = vld [vmem:[%s139 + $0xb0] sm:$0xff]
      %v170 = vld [vmem:[%s139 + $0xb8] sm:$0xff]
      %v171 = vld [vmem:[%s139 + $0xc0] sm:$0xff]
      %v172 = vld [vmem:[%s139 + $0xc8] sm:$0xff]
      %v173 = vld [vmem:[%s139 + $0xd0] sm:$0xff]
      %v174 = vld [vmem:[%s139 + $0xd8] sm:$0xff]
      %v175 = vld [vmem:[%s139 + $0xe0] sm:$0xff]
      %v176 = vld [vmem:[%s139 + $0xe8] sm:$0xff]
      %v177 = vld [vmem:[%s139 + $0xf0] sm:$0xff]
      %v178 = vld [vmem:[%s139 + $0xf8] sm:$0xff]
      %vm179 = vcmask 146432
      %v180 = vsel %vm179, %v147, 0.0
      %v181 = vsel %vm179, %v148, 0.0
      %v182 = vsel %vm179, %v149, 0.0
      %v183 = vsel %vm179, %v150, 0.0
      %v184 = vsel %vm179, %v151, 0.0
      %v185 = vsel %vm179, %v152, 0.0
      %v186 = vsel %vm179, %v153, 0.0
      %v187 = vsel %vm179, %v154, 0.0
      %v188 = vsel %vm179, %v155, 0.0
      %v189 = vsel %vm179, %v156, 0.0
      %v190 = vsel %vm179, %v157, 0.0
      %v191 = vsel %vm179, %v158, 0.0
      %v192 = vsel %vm179, %v159, 0.0
      %v193 = vsel %vm179, %v160, 0.0
      %v194 = vsel %vm179, %v161, 0.0
      %v195 = vsel %vm179, %v162, 0.0
      %v196 = vsel %vm179, %v163, 0.0
      %v197 = vsel %vm179, %v164, 0.0
      %v198 = vsel %vm179, %v165, 0.0
      %v199 = vsel %vm179, %v166, 0.0
      %v200 = vsel %vm179, %v167, 0.0
      %v201 = vsel %vm179, %v168, 0.0
      %v202 = vsel %vm179, %v169, 0.0
      %v203 = vsel %vm179, %v170, 0.0
      %v204 = vsel %vm179, %v171, 0.0
      %v205 = vsel %vm179, %v172, 0.0
      %v206 = vsel %vm179, %v173, 0.0
      %v207 = vsel %vm179, %v174, 0.0
      %v208 = vsel %vm179, %v175, 0.0
      %v209 = vsel %vm179, %v176, 0.0
      %v210 = vsel %vm179, %v177, 0.0
      %v211 = vsel %vm179, %v178, 0.0
      %v212 = vlaneseq
      %v213 = vand.u32 %v212, 127
      %vm214 = vcmp.eq.s32.totalorder %v213, 127
      %v215 = vsel %vm214, 1.0, %v180
      %v216 = vsel %vm214, 1.0, %v181
      %v217 = vsel %vm214, 1.0, %v182
      %v218 = vsel %vm214, 1.0, %v183
      %v219 = vsel %vm214, 1.0, %v184
      %v220 = vsel %vm214, 1.0, %v185
      %v221 = vsel %vm214, 1.0, %v186
      %v222 = vsel %vm214, 1.0, %v187
      %v223 = vsel %vm214, 1.0, %v188
      %v224 = vsel %vm214, 1.0, %v189
      %v225 = vsel %vm214, 1.0, %v190
      %v226 = vsel %vm214, 1.0, %v191
      %v227 = vsel %vm214, 1.0, %v192
      %v228 = vsel %vm214, 1.0, %v193
      %v229 = vsel %vm214, 1.0, %v194
      %v230 = vsel %vm214, 1.0, %v195
      %v231 = vsel %vm214, 1.0, %v196
      %v232 = vsel %vm214, 1.0, %v197
      %v233 = vsel %vm214, 1.0, %v198
      %v234 = vsel %vm214, 1.0, %v199
      %v235 = vsel %vm214, 1.0, %v200
      %v236 = vsel %vm214, 1.0, %v201
      %v237 = vsel %vm214, 1.0, %v202
      %v238 = vsel %vm214, 1.0, %v203
      %v239 = vsel %vm214, 1.0, %v204
      %v240 = vsel %vm214, 1.0, %v205
      %v241 = vsel %vm214, 1.0, %v206
      %v242 = vsel %vm214, 1.0, %v207
      %v243 = vsel %vm214, 1.0, %v208
      %v244 = vsel %vm214, 1.0, %v209
      %v245 = vsel %vm214, 1.0, %v210
      %v246 = vsel %vm214, 1.0, %v211
      %v247 = vld [vmem:[%s1] sm:$0xff]
      %v248 = vld [vmem:[%s1 + $0x8] sm:$0xff]
      %v249 = vld [vmem:[%s1 + $0x10] sm:$0xff]
      %v250 = vld [vmem:[%s1 + $0x18] sm:$0xff]
      %v251 = vld [vmem:[%s1 + $0x20] sm:$0xff]
      %v252 = vld [vmem:[%s1 + $0x28] sm:$0xff]
      %v253 = vld [vmem:[%s1 + $0x30] sm:$0xff]
      %v254 = vld [vmem:[%s1 + $0x38] sm:$0xff]
      %v255 = vld [vmem:[%s1 + $0x40] sm:$0xff]
      %v256 = vld [vmem:[%s1 + $0x48] sm:$0xff]
      %v257 = vld [vmem:[%s1 + $0x50] sm:$0xff]
      %v258 = vld [vmem:[%s1 + $0x58] sm:$0xff]
      %v259 = vld [vmem:[%s1 + $0x60] sm:$0xff]
      %v260 = vld [vmem:[%s1 + $0x68] sm:$0xff]
      %v261 = vld [vmem:[%s1 + $0x70] sm:$0xff]
      %v262 = vld [vmem:[%s1 + $0x78] sm:$0xff]
      %263 = vmatprep.subr.mxu0 0.0
      %264 = vmatpush1.msra.mxu0 %v262
      %265 = vmatprep.subr.mxu0 0.0
      %266 = vmatpush1.msra.mxu0 %v261
      %267 = vmatprep.subr.mxu0 0.0
      %268 = vmatpush1.msra.mxu0 %v260
      %269 = vmatprep.subr.mxu0 0.0
      %270 = vmatpush1.msra.mxu0 %v259
      %271 = vmatprep.subr.mxu0 0.0
      %272 = vmatpush1.msra.mxu0 %v258
      %273 = vmatprep.subr.mxu0 0.0
      %274 = vmatpush1.msra.mxu0 %v257
      %275 = vmatprep.subr.mxu0 0.0
      %276 = vmatpush1.msra.mxu0 %v256
      %277 = vmatprep.subr.mxu0 0.0
      %278 = vmatpush1.msra.mxu0 %v255
      %279 = vmatprep.subr.mxu0 0.0
      %280 = vmatpush1.msra.mxu0 %v254
      %281 = vmatprep.subr.mxu0 0.0
      %282 = vmatpush1.msra.mxu0 %v253
      %283 = vmatprep.subr.mxu0 0.0
      %284 = vmatpush1.msra.mxu0 %v252
      %285 = vmatprep.subr.mxu0 0.0
      %286 = vmatpush1.msra.mxu0 %v251
      %287 = vmatprep.subr.mxu0 0.0
      %288 = vmatpush1.msra.mxu0 %v250
      %289 = vmatprep.subr.mxu0 0.0
      %290 = vmatpush1.msra.mxu0 %v249
      %291 = vmatprep.subr.mxu0 0.0
      %292 = vmatpush1.msra.mxu0 %v248
      %293 = vmatprep.subr.mxu0 0.0
      %294 = vmatpush1.msra.mxu0 %v247
      %295 = vmatprep.subr.mxu0 0.0
      %296 = vmatpush2.msra.mxu0 0.0
      %297 = vmatprep.subr.mxu0 0.0
      %298 = vmatpush2.msra.mxu0 0.0
      %299 = vmatprep.subr.mxu0 0.0
      %300 = vmatpush2.msra.mxu0 0.0
      %301 = vmatprep.subr.mxu0 0.0
      %302 = vmatpush2.msra.mxu0 0.0
      %303 = vmatprep.subr.mxu0 0.0
      %304 = vmatpush2.msra.mxu0 0.0
      %305 = vmatprep.subr.mxu0 0.0
      %306 = vmatpush2.msra.mxu0 0.0
      %307 = vmatprep.subr.mxu0 0.0
      %308 = vmatpush2.msra.mxu0 0.0
      %309 = vmatprep.subr.mxu0 0.0
      %310 = vmatpush2.msra.mxu0 0.0
      %311 = vmatprep.subr.mxu0 0.0
      %312 = vmatpush2.msra.mxu0 0.0
      %313 = vmatprep.subr.mxu0 0.0
      %314 = vmatpush2.msra.mxu0 0.0
      %315 = vmatprep.subr.mxu0 0.0
      %316 = vmatpush2.msra.mxu0 0.0
      %317 = vmatprep.subr.mxu0 0.0
      %318 = vmatpush2.msra.mxu0 0.0
      %319 = vmatprep.subr.mxu0 0.0
      %320 = vmatpush2.msra.mxu0 0.0
      %321 = vmatprep.subr.mxu0 0.0
      %322 = vmatpush2.msra.mxu0 0.0
      %323 = vmatprep.subr.mxu0 0.0
      %324 = vmatpush2.msra.mxu0 0.0
      %325 = vmatprep.subr.mxu0 0.0
      %326 = vmatpush2.msra.mxu0 0.0
      %327 = vmatprep.mubr.f32.mxu0 0.0
      %328 = vmatmul.mubr.f32.gmra.mxu0 %v215
      %v329 = vpop.f32.mrf.mxu0
      %v330 = vadd.f32 0.0, %v329
      %v331 = vpop.f32.mrf.mxu0
      %332 = vmatprep.mubr.f32.mxu0 0.0
      %333 = vmatmul.mubr.f32.gmra.mxu0 %v216
      %v334 = vpop.f32.mrf.mxu0
      %v335 = vadd.f32 0.0, %v334
      %v336 = vpop.f32.mrf.mxu0
      %337 = vmatprep.mubr.f32.mxu0 0.0
      %338 = vmatmul.mubr.f32.gmra.mxu0 %v217
      %v339 = vpop.f32.mrf.mxu0
      %v340 = vadd.f32 0.0, %v339
      %v341 = vpop.f32.mrf.mxu0
      %342 = vmatprep.mubr.f32.mxu0 0.0
      %343 = vmatmul.mubr.f32.gmra.mxu0 %v218
      %v344 = vpop.f32.mrf.mxu0
      %v345 = vadd.f32 0.0, %v344
      %v346 = vpop.f32.mrf.mxu0
      %347 = vmatprep.mubr.f32.mxu0 0.0
      %348 = vmatmul.mubr.f32.gmra.mxu0 %v219
      %v349 = vpop.f32.mrf.mxu0
      %v350 = vadd.f32 0.0, %v349
      %v351 = vpop.f32.mrf.mxu0
      %352 = vmatprep.mubr.f32.mxu0 0.0
      %353 = vmatmul.mubr.f32.gmra.mxu0 %v220
      %v354 = vpop.f32.mrf.mxu0
      %v355 = vadd.f32 0.0, %v354
      %v356 = vpop.f32.mrf.mxu0
      %357 = vmatprep.mubr.f32.mxu0 0.0
      %358 = vmatmul.mubr.f32.gmra.mxu0 %v221
      %v359 = vpop.f32.mrf.mxu0
      %v360 = vadd.f32 0.0, %v359
      %v361 = vpop.f32.mrf.mxu0
      %362 = vmatprep.mubr.f32.mxu0 0.0
      %363 = vmatmul.mubr.f32.gmra.mxu0 %v222
      %v364 = vpop.f32.mrf.mxu0
      %v365 = vadd.f32 0.0, %v364
      %v366 = vpop.f32.mrf.mxu0
      %367 = vmatprep.mubr.f32.mxu0 0.0
      %368 = vmatmul.mubr.f32.gmra.mxu0 %v223
      %v369 = vpop.f32.mrf.mxu0
      %v370 = vadd.f32 0.0, %v369
      %v371 = vpop.f32.mrf.mxu0
      %372 = vmatprep.mubr.f32.mxu0 0.0
      %373 = vmatmul.mubr.f32.gmra.mxu0 %v224
      %v374 = vpop.f32.mrf.mxu0
      %v375 = vadd.f32 0.0, %v374
      %v376 = vpop.f32.mrf.mxu0
      %377 = vmatprep.mubr.f32.mxu0 0.0
      %378 = vmatmul.mubr.f32.gmra.mxu0 %v225
      %v379 = vpop.f32.mrf.mxu0
      %v380 = vadd.f32 0.0, %v379
      %v381 = vpop.f32.mrf.mxu0
      %382 = vmatprep.mubr.f32.mxu0 0.0
      %383 = vmatmul.mubr.f32.gmra.mxu0 %v226
      %v384 = vpop.f32.mrf.mxu0
      %v385 = vadd.f32 0.0, %v384
      %v386 = vpop.f32.mrf.mxu0
      %387 = vmatprep.mubr.f32.mxu0 0.0
      %388 = vmatmul.mubr.f32.gmra.mxu0 %v227
      %v389 = vpop.f32.mrf.mxu0
      %v390 = vadd.f32 0.0, %v389
      %v391 = vpop.f32.mrf.mxu0
      %392 = vmatprep.mubr.f32.mxu0 0.0
      %393 = vmatmul.mubr.f32.gmra.mxu0 %v228
      %v394 = vpop.f32.mrf.mxu0
      %v395 = vadd.f32 0.0, %v394
      %v396 = vpop.f32.mrf.mxu0
      %397 = vmatprep.mubr.f32.mxu0 0.0
      %398 = vmatmul.mubr.f32.gmra.mxu0 %v229
      %v399 = vpop.f32.mrf.mxu0
      %v400 = vadd.f32 0.0, %v399
      %v401 = vpop.f32.mrf.mxu0
      %402 = vmatprep.mubr.f32.mxu0 0.0
      %403 = vmatmul.mubr.f32.gmra.mxu0 %v230
      %v404 = vpop.f32.mrf.mxu0
      %v405 = vadd.f32 0.0, %v404
      %v406 = vpop.f32.mrf.mxu0
      %407 = vmatprep.mubr.f32.mxu0 0.0
      %408 = vmatmul.mubr.f32.gmra.mxu0 %v231
      %v409 = vpop.f32.mrf.mxu0
      %v410 = vadd.f32 0.0, %v409
      %v411 = vpop.f32.mrf.mxu0
      %412 = vmatprep.mubr.f32.mxu0 0.0
      %413 = vmatmul.mubr.f32.gmra.mxu0 %v232
      %v414 = vpop.f32.mrf.mxu0
      %v415 = vadd.f32 0.0, %v414
      %v416 = vpop.f32.mrf.mxu0
      %417 = vmatprep.mubr.f32.mxu0 0.0
      %418 = vmatmul.mubr.f32.gmra.mxu0 %v233
      %v419 = vpop.f32.mrf.mxu0
      %v420 = vadd.f32 0.0, %v419
      %v421 = vpop.f32.mrf.mxu0
      %422 = vmatprep.mubr.f32.mxu0 0.0
      %423 = vmatmul.mubr.f32.gmra.mxu0 %v234
      %v424 = vpop.f32.mrf.mxu0
      %v425 = vadd.f32 0.0, %v424
      %v426 = vpop.f32.mrf.mxu0
      %427 = vmatprep.mubr.f32.mxu0 0.0
      %428 = vmatmul.mubr.f32.gmra.mxu0 %v235
      %v429 = vpop.f32.mrf.mxu0
      %v430 = vadd.f32 0.0, %v429
      %v431 = vpop.f32.mrf.mxu0
      %432 = vmatprep.mubr.f32.mxu0 0.0
      %433 = vmatmul.mubr.f32.gmra.mxu0 %v236
      %v434 = vpop.f32.mrf.mxu0
      %v435 = vadd.f32 0.0, %v434
      %v436 = vpop.f32.mrf.mxu0
      %437 = vmatprep.mubr.f32.mxu0 0.0
      %438 = vmatmul.mubr.f32.gmra.mxu0 %v237
      %v439 = vpop.f32.mrf.mxu0
      %v440 = vadd.f32 0.0, %v439
      %v441 = vpop.f32.mrf.mxu0
      %442 = vmatprep.mubr.f32.mxu0 0.0
      %443 = vmatmul.mubr.f32.gmra.mxu0 %v238
      %v444 = vpop.f32.mrf.mxu0
      %v445 = vadd.f32 0.0, %v444
      %v446 = vpop.f32.mrf.mxu0
      %447 = vmatprep.mubr.f32.mxu0 0.0
      %448 = vmatmul.mubr.f32.gmra.mxu0 %v239
      %v449 = vpop.f32.mrf.mxu0
      %v450 = vadd.f32 0.0, %v449
      %v451 = vpop.f32.mrf.mxu0
      %452 = vmatprep.mubr.f32.mxu0 0.0
      %453 = vmatmul.mubr.f32.gmra.mxu0 %v240
      %v454 = vpop.f32.mrf.mxu0
      %v455 = vadd.f32 0.0, %v454
      %v456 = vpop.f32.mrf.mxu0
      %457 = vmatprep.mubr.f32.mxu0 0.0
      %458 = vmatmul.mubr.f32.gmra.mxu0 %v241
      %v459 = vpop.f32.mrf.mxu0
      %v460 = vadd.f32 0.0, %v459
      %v461 = vpop.f32.mrf.mxu0
      %462 = vmatprep.mubr.f32.mxu0 0.0
      %463 = vmatmul.mubr.f32.gmra.mxu0 %v242
      %v464 = vpop.f32.mrf.mxu0
      %v465 = vadd.f32 0.0, %v464
      %v466 = vpop.f32.mrf.mxu0
      %467 = vmatprep.mubr.f32.mxu0 0.0
      %468 = vmatmul.mubr.f32.gmra.mxu0 %v243
      %v469 = vpop.f32.mrf.mxu0
      %v470 = vadd.f32 0.0, %v469
      %v471 = vpop.f32.mrf.mxu0
      %472 = vmatprep.mubr.f32.mxu0 0.0
      %473 = vmatmul.mubr.f32.gmra.mxu0 %v244
      %v474 = vpop.f32.mrf.mxu0
      %v475 = vadd.f32 0.0, %v474
      %v476 = vpop.f32.mrf.mxu0
      %477 = vmatprep.mubr.f32.mxu0 0.0
      %478 = vmatmul.mubr.f32.gmra.mxu0 %v245
      %v479 = vpop.f32.mrf.mxu0
      %v480 = vadd.f32 0.0, %v479
      %v481 = vpop.f32.mrf.mxu0
      %482 = vmatprep.mubr.f32.mxu0 0.0
      %483 = vmatmul.mubr.f32.gmra.mxu0 %v246
      %v484 = vpop.f32.mrf.mxu0
      %v485 = vadd.f32 0.0, %v484
      %v486 = vpop.f32.mrf.mxu0
      %487 = vdwg.mxu0
      %v488 = vmax.f32 %v330, 0.0
      %v489 = vmax.f32 %v335, 0.0
      %v490 = vmax.f32 %v340, 0.0
      %v491 = vmax.f32 %v345, 0.0
      %v492 = vmax.f32 %v350, 0.0
      %v493 = vmax.f32 %v355, 0.0
      %v494 = vmax.f32 %v360, 0.0
      %v495 = vmax.f32 %v365, 0.0
      %v496 = vmax.f32 %v370, 0.0
      %v497 = vmax.f32 %v375, 0.0
      %v498 = vmax.f32 %v380, 0.0
      %v499 = vmax.f32 %v385, 0.0
      %v500 = vmax.f32 %v390, 0.0
      %v501 = vmax.f32 %v395, 0.0
      %v502 = vmax.f32 %v400, 0.0
      %v503 = vmax.f32 %v405, 0.0
      %v504 = vmax.f32 %v410, 0.0
      %v505 = vmax.f32 %v415, 0.0
      %v506 = vmax.f32 %v420, 0.0
      %v507 = vmax.f32 %v425, 0.0
      %v508 = vmax.f32 %v430, 0.0
      %v509 = vmax.f32 %v435, 0.0
      %v510 = vmax.f32 %v440, 0.0
      %v511 = vmax.f32 %v445, 0.0
      %v512 = vmax.f32 %v450, 0.0
      %v513 = vmax.f32 %v455, 0.0
      %v514 = vmax.f32 %v460, 0.0
      %v515 = vmax.f32 %v465, 0.0
      %v516 = vmax.f32 %v470, 0.0
      %v517 = vmax.f32 %v475, 0.0
      %v518 = vmax.f32 %v480, 0.0
      %v519 = vmax.f32 %v485, 0.0
      %v520 = vld [vmem:[%s1 + $0x80] sm:$0xff]
      %v521 = vld [vmem:[%s1 + $0x88] sm:$0xff]
      %v522 = vld [vmem:[%s1 + $0x90] sm:$0xff]
      %v523 = vld [vmem:[%s1 + $0x98] sm:$0xff]
      %v524 = vld [vmem:[%s1 + $0xa0] sm:$0xff]
      %v525 = vld [vmem:[%s1 + $0xa8] sm:$0xff]
      %v526 = vld [vmem:[%s1 + $0xb0] sm:$0xff]
      %v527 = vld [vmem:[%s1 + $0xb8] sm:$0xff]
      %v528 = vld [vmem:[%s1 + $0xc0] sm:$0xff]
      %v529 = vld [vmem:[%s1 + $0xc8] sm:$0xff]
      %v530 = vld [vmem:[%s1 + $0xd0] sm:$0xff]
      %v531 = vld [vmem:[%s1 + $0xd8] sm:$0xff]
      %v532 = vld [vmem:[%s1 + $0xe0] sm:$0xff]
      %v533 = vld [vmem:[%s1 + $0xe8] sm:$0xff]
      %v534 = vld [vmem:[%s1 + $0xf0] sm:$0xff]
      %v535 = vld [vmem:[%s1 + $0xf8] sm:$0xff]
      %536 = vmatprep.subr.mxu0 0.0
      %537 = vmatpush1.msra.mxu0 %v535
      %538 = vmatprep.subr.mxu0 0.0
      %539 = vmatpush1.msra.mxu0 %v534
      %540 = vmatprep.subr.mxu0 0.0
      %541 = vmatpush1.msra.mxu0 %v533
      %542 = vmatprep.subr.mxu0 0.0
      %543 = vmatpush1.msra.mxu0 %v532
      %544 = vmatprep.subr.mxu0 0.0
      %545 = vmatpush1.msra.mxu0 %v531
      %546 = vmatprep.subr.mxu0 0.0
      %547 = vmatpush1.msra.mxu0 %v530
      %548 = vmatprep.subr.mxu0 0.0
      %549 = vmatpush1.msra.mxu0 %v529
      %550 = vmatprep.subr.mxu0 0.0
      %551 = vmatpush1.msra.mxu0 %v528
      %552 = vmatprep.subr.mxu0 0.0
      %553 = vmatpush1.msra.mxu0 %v527
      %554 = vmatprep.subr.mxu0 0.0
      %555 = vmatpush1.msra.mxu0 %v526
      %556 = vmatprep.subr.mxu0 0.0
      %557 = vmatpush1.msra.mxu0 %v525
      %558 = vmatprep.subr.mxu0 0.0
      %559 = vmatpush1.msra.mxu0 %v524
      %560 = vmatprep.subr.mxu0 0.0
      %561 = vmatpush1.msra.mxu0 %v523
      %562 = vmatprep.subr.mxu0 0.0
      %563 = vmatpush1.msra.mxu0 %v522
      %564 = vmatprep.subr.mxu0 0.0
      %565 = vmatpush1.msra.mxu0 %v521
      %566 = vmatprep.subr.mxu0 0.0
      %567 = vmatpush1.msra.mxu0 %v520
      %568 = vmatprep.subr.mxu0 0.0
      %569 = vmatpush2.msra.mxu0 0.0
      %570 = vmatprep.subr.mxu0 0.0
      %571 = vmatpush2.msra.mxu0 0.0
      %572 = vmatprep.subr.mxu0 0.0
      %573 = vmatpush2.msra.mxu0 0.0
      %574 = vmatprep.subr.mxu0 0.0
      %575 = vmatpush2.msra.mxu0 0.0
      %576 = vmatprep.subr.mxu0 0.0
      %577 = vmatpush2.msra.mxu0 0.0
      %578 = vmatprep.subr.mxu0 0.0
      %579 = vmatpush2.msra.mxu0 0.0
      %580 = vmatprep.subr.mxu0 0.0
      %581 = vmatpush2.msra.mxu0 0.0
      %582 = vmatprep.subr.mxu0 0.0
      %583 = vmatpush2.msra.mxu0 0.0
      %584 = vmatprep.subr.mxu0 0.0
      %585 = vmatpush2.msra.mxu0 0.0
      %586 = vmatprep.subr.mxu0 0.0
      %587 = vmatpush2.msra.mxu0 0.0
      %588 = vmatprep.subr.mxu0 0.0
      %589 = vmatpush2.msra.mxu0 0.0
      %590 = vmatprep.subr.mxu0 0.0
      %591 = vmatpush2.msra.mxu0 0.0
      %592 = vmatprep.subr.mxu0 0.0
      %593 = vmatpush2.msra.mxu0 0.0
      %594 = vmatprep.subr.mxu0 0.0
      %595 = vmatpush2.msra.mxu0 0.0
      %596 = vmatprep.subr.mxu0 0.0
      %597 = vmatpush2.msra.mxu0 0.0
      %598 = vmatprep.subr.mxu0 0.0
      %599 = vmatpush2.msra.mxu0 0.0
      %600 = vmatprep.mubr.f32.mxu0 0.0
      %601 = vmatmul.mubr.f32.gmra.mxu0 %v488
      %v602 = vpop.f32.mrf.mxu0
      %v603 = vadd.f32 0.0, %v602
      %v604 = vpop.f32.mrf.mxu0
      %605 = vmatprep.mubr.f32.mxu0 0.0
      %606 = vmatmul.mubr.f32.gmra.mxu0 %v489
      %v607 = vpop.f32.mrf.mxu0
      %v608 = vadd.f32 0.0, %v607
      %v609 = vpop.f32.mrf.mxu0
      %610 = vmatprep.mubr.f32.mxu0 0.0
      %611 = vmatmul.mubr.f32.gmra.mxu0 %v490
      %v612 = vpop.f32.mrf.mxu0
      %v613 = vadd.f32 0.0, %v612
      %v614 = vpop.f32.mrf.mxu0
      %615 = vmatprep.mubr.f32.mxu0 0.0
      %616 = vmatmul.mubr.f32.gmra.mxu0 %v491
      %v617 = vpop.f32.mrf.mxu0
      %v618 = vadd.f32 0.0, %v617
      %v619 = vpop.f32.mrf.mxu0
      %620 = vmatprep.mubr.f32.mxu0 0.0
      %621 = vmatmul.mubr.f32.gmra.mxu0 %v492
      %v622 = vpop.f32.mrf.mxu0
      %v623 = vadd.f32 0.0, %v622
      %v624 = vpop.f32.mrf.mxu0
      %625 = vmatprep.mubr.f32.mxu0 0.0
      %626 = vmatmul.mubr.f32.gmra.mxu0 %v493
      %v627 = vpop.f32.mrf.mxu0
      %v628 = vadd.f32 0.0, %v627
      %v629 = vpop.f32.mrf.mxu0
      %630 = vmatprep.mubr.f32.mxu0 0.0
      %631 = vmatmul.mubr.f32.gmra.mxu0 %v494
      %v632 = vpop.f32.mrf.mxu0
      %v633 = vadd.f32 0.0, %v632
      %v634 = vpop.f32.mrf.mxu0
      %635 = vmatprep.mubr.f32.mxu0 0.0
      %636 = vmatmul.mubr.f32.gmra.mxu0 %v495
      %v637 = vpop.f32.mrf.mxu0
      %v638 = vadd.f32 0.0, %v637
      %v639 = vpop.f32.mrf.mxu0
      %640 = vmatprep.mubr.f32.mxu0 0.0
      %641 = vmatmul.mubr.f32.gmra.mxu0 %v496
      %v642 = vpop.f32.mrf.mxu0
      %v643 = vadd.f32 0.0, %v642
      %v644 = vpop.f32.mrf.mxu0
      %645 = vmatprep.mubr.f32.mxu0 0.0
      %646 = vmatmul.mubr.f32.gmra.mxu0 %v497
      %v647 = vpop.f32.mrf.mxu0
      %v648 = vadd.f32 0.0, %v647
      %v649 = vpop.f32.mrf.mxu0
      %650 = vmatprep.mubr.f32.mxu0 0.0
      %651 = vmatmul.mubr.f32.gmra.mxu0 %v498
      %v652 = vpop.f32.mrf.mxu0
      %v653 = vadd.f32 0.0, %v652
      %v654 = vpop.f32.mrf.mxu0
      %655 = vmatprep.mubr.f32.mxu0 0.0
      %656 = vmatmul.mubr.f32.gmra.mxu0 %v499
      %v657 = vpop.f32.mrf.mxu0
      %v658 = vadd.f32 0.0, %v657
      %v659 = vpop.f32.mrf.mxu0
      %660 = vmatprep.mubr.f32.mxu0 0.0
      %661 = vmatmul.mubr.f32.gmra.mxu0 %v500
      %v662 = vpop.f32.mrf.mxu0
      %v663 = vadd.f32 0.0, %v662
      %v664 = vpop.f32.mrf.mxu0
      %665 = vmatprep.mubr.f32.mxu0 0.0
      %666 = vmatmul.mubr.f32.gmra.mxu0 %v501
      %v667 = vpop.f32.mrf.mxu0
      %v668 = vadd.f32 0.0, %v667
      %v669 = vpop.f32.mrf.mxu0
      %670 = vmatprep.mubr.f32.mxu0 0.0
      %671 = vmatmul.mubr.f32.gmra.mxu0 %v502
      %v672 = vpop.f32.mrf.mxu0
      %v673 = vadd.f32 0.0, %v672
      %v674 = vpop.f32.mrf.mxu0
      %675 = vmatprep.mubr.f32.mxu0 0.0
      %676 = vmatmul.mubr.f32.gmra.mxu0 %v503
      %v677 = vpop.f32.mrf.mxu0
      %v678 = vadd.f32 0.0, %v677
      %v679 = vpop.f32.mrf.mxu0
      %680 = vmatprep.mubr.f32.mxu0 0.0
      %681 = vmatmul.mubr.f32.gmra.mxu0 %v504
      %v682 = vpop.f32.mrf.mxu0
      %v683 = vadd.f32 0.0, %v682
      %v684 = vpop.f32.mrf.mxu0
      %685 = vmatprep.mubr.f32.mxu0 0.0
      %686 = vmatmul.mubr.f32.gmra.mxu0 %v505
      %v687 = vpop.f32.mrf.mxu0
      %v688 = vadd.f32 0.0, %v687
      %v689 = vpop.f32.mrf.mxu0
      %690 = vmatprep.mubr.f32.mxu0 0.0
      %691 = vmatmul.mubr.f32.gmra.mxu0 %v506
      %v692 = vpop.f32.mrf.mxu0
      %v693 = vadd.f32 0.0, %v692
      %v694 = vpop.f32.mrf.mxu0
      %695 = vmatprep.mubr.f32.mxu0 0.0
      %696 = vmatmul.mubr.f32.gmra.mxu0 %v507
      %v697 = vpop.f32.mrf.mxu0
      %v698 = vadd.f32 0.0, %v697
      %v699 = vpop.f32.mrf.mxu0
      %700 = vmatprep.mubr.f32.mxu0 0.0
      %701 = vmatmul.mubr.f32.gmra.mxu0 %v508
      %v702 = vpop.f32.mrf.mxu0
      %v703 = vadd.f32 0.0, %v702
      %v704 = vpop.f32.mrf.mxu0
      %705 = vmatprep.mubr.f32.mxu0 0.0
      %706 = vmatmul.mubr.f32.gmra.mxu0 %v509
      %v707 = vpop.f32.mrf.mxu0
      %v708 = vadd.f32 0.0, %v707
      %v709 = vpop.f32.mrf.mxu0
      %710 = vmatprep.mubr.f32.mxu0 0.0
      %711 = vmatmul.mubr.f32.gmra.mxu0 %v510
      %v712 = vpop.f32.mrf.mxu0
      %v713 = vadd.f32 0.0, %v712
      %v714 = vpop.f32.mrf.mxu0
      %715 = vmatprep.mubr.f32.mxu0 0.0
      %716 = vmatmul.mubr.f32.gmra.mxu0 %v511
      %v717 = vpop.f32.mrf.mxu0
      %v718 = vadd.f32 0.0, %v717
      %v719 = vpop.f32.mrf.mxu0
      %720 = vmatprep.mubr.f32.mxu0 0.0
      %721 = vmatmul.mubr.f32.gmra.mxu0 %v512
      %v722 = vpop.f32.mrf.mxu0
      %v723 = vadd.f32 0.0, %v722
      %v724 = vpop.f32.mrf.mxu0
      %725 = vmatprep.mubr.f32.mxu0 0.0
      %726 = vmatmul.mubr.f32.gmra.mxu0 %v513
      %v727 = vpop.f32.mrf.mxu0
      %v728 = vadd.f32 0.0, %v727
      %v729 = vpop.f32.mrf.mxu0
      %730 = vmatprep.mubr.f32.mxu0 0.0
      %731 = vmatmul.mubr.f32.gmra.mxu0 %v514
      %v732 = vpop.f32.mrf.mxu0
      %v733 = vadd.f32 0.0, %v732
      %v734 = vpop.f32.mrf.mxu0
      %735 = vmatprep.mubr.f32.mxu0 0.0
      %736 = vmatmul.mubr.f32.gmra.mxu0 %v515
      %v737 = vpop.f32.mrf.mxu0
      %v738 = vadd.f32 0.0, %v737
      %v739 = vpop.f32.mrf.mxu0
      %740 = vmatprep.mubr.f32.mxu0 0.0
      %741 = vmatmul.mubr.f32.gmra.mxu0 %v516
      %v742 = vpop.f32.mrf.mxu0
      %v743 = vadd.f32 0.0, %v742
      %v744 = vpop.f32.mrf.mxu0
      %745 = vmatprep.mubr.f32.mxu0 0.0
      %746 = vmatmul.mubr.f32.gmra.mxu0 %v517
      %v747 = vpop.f32.mrf.mxu0
      %v748 = vadd.f32 0.0, %v747
      %v749 = vpop.f32.mrf.mxu0
      %750 = vmatprep.mubr.f32.mxu0 0.0
      %751 = vmatmul.mubr.f32.gmra.mxu0 %v518
      %v752 = vpop.f32.mrf.mxu0
      %v753 = vadd.f32 0.0, %v752
      %v754 = vpop.f32.mrf.mxu0
      %755 = vmatprep.mubr.f32.mxu0 0.0
      %756 = vmatmul.mubr.f32.gmra.mxu0 %v519
      %v757 = vpop.f32.mrf.mxu0
      %v758 = vadd.f32 0.0, %v757
      %v759 = vpop.f32.mrf.mxu0
      %760 = vdwg.mxu0
      %v761 = vmax.f32 %v603, 0.0
      %v762 = vmax.f32 %v608, 0.0
      %v763 = vmax.f32 %v613, 0.0
      %v764 = vmax.f32 %v618, 0.0
      %v765 = vmax.f32 %v623, 0.0
      %v766 = vmax.f32 %v628, 0.0
      %v767 = vmax.f32 %v633, 0.0
      %v768 = vmax.f32 %v638, 0.0
      %v769 = vmax.f32 %v643, 0.0
      %v770 = vmax.f32 %v648, 0.0
      %v771 = vmax.f32 %v653, 0.0
      %v772 = vmax.f32 %v658, 0.0
      %v773 = vmax.f32 %v663, 0.0
      %v774 = vmax.f32 %v668, 0.0
      %v775 = vmax.f32 %v673, 0.0
      %v776 = vmax.f32 %v678, 0.0
      %v777 = vmax.f32 %v683, 0.0
      %v778 = vmax.f32 %v688, 0.0
      %v779 = vmax.f32 %v693, 0.0
      %v780 = vmax.f32 %v698, 0.0
      %v781 = vmax.f32 %v703, 0.0
      %v782 = vmax.f32 %v708, 0.0
      %v783 = vmax.f32 %v713, 0.0
      %v784 = vmax.f32 %v718, 0.0
      %v785 = vmax.f32 %v723, 0.0
      %v786 = vmax.f32 %v728, 0.0
      %v787 = vmax.f32 %v733, 0.0
      %v788 = vmax.f32 %v738, 0.0
      %v789 = vmax.f32 %v743, 0.0
      %v790 = vmax.f32 %v748, 0.0
      %v791 = vmax.f32 %v753, 0.0
      %v792 = vmax.f32 %v758, 0.0
      %v793 = vld [vmem:[%s1 + $0x100] sm:$0xff]
      %v794 = vld [vmem:[%s1 + $0x108] sm:$0xff]
      %v795 = vld [vmem:[%s1 + $0x110] sm:$0xff]
      %v796 = vld [vmem:[%s1 + $0x118] sm:$0xff]
      %v797 = vld [vmem:[%s1 + $0x120] sm:$0xff]
      %v798 = vld [vmem:[%s1 + $0x128] sm:$0xff]
      %v799 = vld [vmem:[%s1 + $0x130] sm:$0xff]
      %v800 = vld [vmem:[%s1 + $0x138] sm:$0xff]
      %v801 = vld [vmem:[%s1 + $0x140] sm:$0xff]
      %v802 = vld [vmem:[%s1 + $0x148] sm:$0xff]
      %v803 = vld [vmem:[%s1 + $0x150] sm:$0xff]
      %v804 = vld [vmem:[%s1 + $0x158] sm:$0xff]
      %v805 = vld [vmem:[%s1 + $0x160] sm:$0xff]
      %v806 = vld [vmem:[%s1 + $0x168] sm:$0xff]
      %v807 = vld [vmem:[%s1 + $0x170] sm:$0xff]
      %v808 = vld [vmem:[%s1 + $0x178] sm:$0xff]
      %809 = vmatprep.subr.mxu0 0.0
      %810 = vmatpush1.msra.mxu0 %v808
      %811 = vmatprep.subr.mxu0 0.0
      %812 = vmatpush1.msra.mxu0 %v807
      %813 = vmatprep.subr.mxu0 0.0
      %814 = vmatpush1.msra.mxu0 %v806
      %815 = vmatprep.subr.mxu0 0.0
      %816 = vmatpush1.msra.mxu0 %v805
      %817 = vmatprep.subr.mxu0 0.0
      %818 = vmatpush1.msra.mxu0 %v804
      %819 = vmatprep.subr.mxu0 0.0
      %820 = vmatpush1.msra.mxu0 %v803
      %821 = vmatprep.subr.mxu0 0.0
      %822 = vmatpush1.msra.mxu0 %v802
      %823 = vmatprep.subr.mxu0 0.0
      %824 = vmatpush1.msra.mxu0 %v801
      %825 = vmatprep.subr.mxu0 0.0
      %826 = vmatpush1.msra.mxu0 %v800
      %827 = vmatprep.subr.mxu0 0.0
      %828 = vmatpush1.msra.mxu0 %v799
      %829 = vmatprep.subr.mxu0 0.0
      %830 = vmatpush1.msra.mxu0 %v798
      %831 = vmatprep.subr.mxu0 0.0
      %832 = vmatpush1.msra.mxu0 %v797
      %833 = vmatprep.subr.mxu0 0.0
      %834 = vmatpush1.msra.mxu0 %v796
      %835 = vmatprep.subr.mxu0 0.0
      %836 = vmatpush1.msra.mxu0 %v795
      %837 = vmatprep.subr.mxu0 0.0
      %838 = vmatpush1.msra.mxu0 %v794
      %839 = vmatprep.subr.mxu0 0.0
      %840 = vmatpush1.msra.mxu0 %v793
      %841 = vmatprep.subr.mxu0 0.0
      %842 = vmatpush2.msra.mxu0 0.0
      %843 = vmatprep.subr.mxu0 0.0
      %844 = vmatpush2.msra.mxu0 0.0
      %845 = vmatprep.subr.mxu0 0.0
      %846 = vmatpush2.msra.mxu0 0.0
      %847 = vmatprep.subr.mxu0 0.0
      %848 = vmatpush2.msra.mxu0 0.0
      %849 = vmatprep.subr.mxu0 0.0
      %850 = vmatpush2.msra.mxu0 0.0
      %851 = vmatprep.subr.mxu0 0.0
      %852 = vmatpush2.msra.mxu0 0.0
      %853 = vmatprep.subr.mxu0 0.0
      %854 = vmatpush2.msra.mxu0 0.0
      %855 = vmatprep.subr.mxu0 0.0
      %856 = vmatpush2.msra.mxu0 0.0
      %857 = vmatprep.subr.mxu0 0.0
      %858 = vmatpush2.msra.mxu0 0.0
      %859 = vmatprep.subr.mxu0 0.0
      %860 = vmatpush2.msra.mxu0 0.0
      %861 = vmatprep.subr.mxu0 0.0
      %862 = vmatpush2.msra.mxu0 0.0
      %863 = vmatprep.subr.mxu0 0.0
      %864 = vmatpush2.msra.mxu0 0.0
      %865 = vmatprep.subr.mxu0 0.0
      %866 = vmatpush2.msra.mxu0 0.0
      %867 = vmatprep.subr.mxu0 0.0
      %868 = vmatpush2.msra.mxu0 0.0
      %869 = vmatprep.subr.mxu0 0.0
      %870 = vmatpush2.msra.mxu0 0.0
      %871 = vmatprep.subr.mxu0 0.0
      %872 = vmatpush2.msra.mxu0 0.0
      %873 = vmatprep.mubr.f32.mxu0 0.0
      %874 = vmatmul.mubr.f32.gmra.mxu0 %v761
      %v875 = vpop.f32.mrf.mxu0
      %v876 = vadd.f32 0.0, %v875
      %v877 = vpop.f32.mrf.mxu0
      %878 = vmatprep.mubr.f32.mxu0 0.0
      %879 = vmatmul.mubr.f32.gmra.mxu0 %v762
      %v880 = vpop.f32.mrf.mxu0
      %v881 = vadd.f32 0.0, %v880
      %v882 = vpop.f32.mrf.mxu0
      %883 = vmatprep.mubr.f32.mxu0 0.0
      %884 = vmatmul.mubr.f32.gmra.mxu0 %v763
      %v885 = vpop.f32.mrf.mxu0
      %v886 = vadd.f32 0.0, %v885
      %v887 = vpop.f32.mrf.mxu0
      %888 = vmatprep.mubr.f32.mxu0 0.0
      %889 = vmatmul.mubr.f32.gmra.mxu0 %v764
      %v890 = vpop.f32.mrf.mxu0
      %v891 = vadd.f32 0.0, %v890
      %v892 = vpop.f32.mrf.mxu0
      %893 = vmatprep.mubr.f32.mxu0 0.0
      %894 = vmatmul.mubr.f32.gmra.mxu0 %v765
      %v895 = vpop.f32.mrf.mxu0
      %v896 = vadd.f32 0.0, %v895
      %v897 = vpop.f32.mrf.mxu0
      %898 = vmatprep.mubr.f32.mxu0 0.0
      %899 = vmatmul.mubr.f32.gmra.mxu0 %v766
      %v900 = vpop.f32.mrf.mxu0
      %v901 = vadd.f32 0.0, %v900
      %v902 = vpop.f32.mrf.mxu0
      %903 = vmatprep.mubr.f32.mxu0 0.0
      %904 = vmatmul.mubr.f32.gmra.mxu0 %v767
      %v905 = vpop.f32.mrf.mxu0
      %v906 = vadd.f32 0.0, %v905
      %v907 = vpop.f32.mrf.mxu0
      %908 = vmatprep.mubr.f32.mxu0 0.0
      %909 = vmatmul.mubr.f32.gmra.mxu0 %v768
      %v910 = vpop.f32.mrf.mxu0
      %v911 = vadd.f32 0.0, %v910
      %v912 = vpop.f32.mrf.mxu0
      %913 = vmatprep.mubr.f32.mxu0 0.0
      %914 = vmatmul.mubr.f32.gmra.mxu0 %v769
      %v915 = vpop.f32.mrf.mxu0
      %v916 = vadd.f32 0.0, %v915
      %v917 = vpop.f32.mrf.mxu0
      %918 = vmatprep.mubr.f32.mxu0 0.0
      %919 = vmatmul.mubr.f32.gmra.mxu0 %v770
      %v920 = vpop.f32.mrf.mxu0
      %v921 = vadd.f32 0.0, %v920
      %v922 = vpop.f32.mrf.mxu0
      %923 = vmatprep.mubr.f32.mxu0 0.0
      %924 = vmatmul.mubr.f32.gmra.mxu0 %v771
      %v925 = vpop.f32.mrf.mxu0
      %v926 = vadd.f32 0.0, %v925
      %v927 = vpop.f32.mrf.mxu0
      %928 = vmatprep.mubr.f32.mxu0 0.0
      %929 = vmatmul.mubr.f32.gmra.mxu0 %v772
      %v930 = vpop.f32.mrf.mxu0
      %v931 = vadd.f32 0.0, %v930
      %v932 = vpop.f32.mrf.mxu0
      %933 = vmatprep.mubr.f32.mxu0 0.0
      %934 = vmatmul.mubr.f32.gmra.mxu0 %v773
      %v935 = vpop.f32.mrf.mxu0
      %v936 = vadd.f32 0.0, %v935
      %v937 = vpop.f32.mrf.mxu0
      %938 = vmatprep.mubr.f32.mxu0 0.0
      %939 = vmatmul.mubr.f32.gmra.mxu0 %v774
      %v940 = vpop.f32.mrf.mxu0
      %v941 = vadd.f32 0.0, %v940
      %v942 = vpop.f32.mrf.mxu0
      %943 = vmatprep.mubr.f32.mxu0 0.0
      %944 = vmatmul.mubr.f32.gmra.mxu0 %v775
      %v945 = vpop.f32.mrf.mxu0
      %v946 = vadd.f32 0.0, %v945
      %v947 = vpop.f32.mrf.mxu0
      %948 = vmatprep.mubr.f32.mxu0 0.0
      %949 = vmatmul.mubr.f32.gmra.mxu0 %v776
      %v950 = vpop.f32.mrf.mxu0
      %v951 = vadd.f32 0.0, %v950
      %v952 = vpop.f32.mrf.mxu0
      %953 = vmatprep.mubr.f32.mxu0 0.0
      %954 = vmatmul.mubr.f32.gmra.mxu0 %v777
      %v955 = vpop.f32.mrf.mxu0
      %v956 = vadd.f32 0.0, %v955
      %v957 = vpop.f32.mrf.mxu0
      %958 = vmatprep.mubr.f32.mxu0 0.0
      %959 = vmatmul.mubr.f32.gmra.mxu0 %v778
      %v960 = vpop.f32.mrf.mxu0
      %v961 = vadd.f32 0.0, %v960
      %v962 = vpop.f32.mrf.mxu0
      %963 = vmatprep.mubr.f32.mxu0 0.0
      %964 = vmatmul.mubr.f32.gmra.mxu0 %v779
      %v965 = vpop.f32.mrf.mxu0
      %v966 = vadd.f32 0.0, %v965
      %v967 = vpop.f32.mrf.mxu0
      %968 = vmatprep.mubr.f32.mxu0 0.0
      %969 = vmatmul.mubr.f32.gmra.mxu0 %v780
      %v970 = vpop.f32.mrf.mxu0
      %v971 = vadd.f32 0.0, %v970
      %v972 = vpop.f32.mrf.mxu0
      %973 = vmatprep.mubr.f32.mxu0 0.0
      %974 = vmatmul.mubr.f32.gmra.mxu0 %v781
      %v975 = vpop.f32.mrf.mxu0
      %v976 = vadd.f32 0.0, %v975
      %v977 = vpop.f32.mrf.mxu0
      %978 = vmatprep.mubr.f32.mxu0 0.0
      %979 = vmatmul.mubr.f32.gmra.mxu0 %v782
      %v980 = vpop.f32.mrf.mxu0
      %v981 = vadd.f32 0.0, %v980
      %v982 = vpop.f32.mrf.mxu0
      %983 = vmatprep.mubr.f32.mxu0 0.0
      %984 = vmatmul.mubr.f32.gmra.mxu0 %v783
      %v985 = vpop.f32.mrf.mxu0
      %v986 = vadd.f32 0.0, %v985
      %v987 = vpop.f32.mrf.mxu0
      %988 = vmatprep.mubr.f32.mxu0 0.0
      %989 = vmatmul.mubr.f32.gmra.mxu0 %v784
      %v990 = vpop.f32.mrf.mxu0
      %v991 = vadd.f32 0.0, %v990
      %v992 = vpop.f32.mrf.mxu0
      %993 = vmatprep.mubr.f32.mxu0 0.0
      %994 = vmatmul.mubr.f32.gmra.mxu0 %v785
      %v995 = vpop.f32.mrf.mxu0
      %v996 = vadd.f32 0.0, %v995
      %v997 = vpop.f32.mrf.mxu0
      %998 = vmatprep.mubr.f32.mxu0 0.0
      %999 = vmatmul.mubr.f32.gmra.mxu0 %v786
      %v1000 = vpop.f32.mrf.mxu0
      %v1001 = vadd.f32 0.0, %v1000
      %v1002 = vpop.f32.mrf.mxu0
      %1003 = vmatprep.mubr.f32.mxu0 0.0
      %1004 = vmatmul.mubr.f32.gmra.mxu0 %v787
      %v1005 = vpop.f32.mrf.mxu0
      %v1006 = vadd.f32 0.0, %v1005
      %v1007 = vpop.f32.mrf.mxu0
      %1008 = vmatprep.mubr.f32.mxu0 0.0
      %1009 = vmatmul.mubr.f32.gmra.mxu0 %v788
      %v1010 = vpop.f32.mrf.mxu0
      %v1011 = vadd.f32 0.0, %v1010
      %v1012 = vpop.f32.mrf.mxu0
      %1013 = vmatprep.mubr.f32.mxu0 0.0
      %1014 = vmatmul.mubr.f32.gmra.mxu0 %v789
      %v1015 = vpop.f32.mrf.mxu0
      %v1016 = vadd.f32 0.0, %v1015
      %v1017 = vpop.f32.mrf.mxu0
      %1018 = vmatprep.mubr.f32.mxu0 0.0
      %1019 = vmatmul.mubr.f32.gmra.mxu0 %v790
      %v1020 = vpop.f32.mrf.mxu0
      %v1021 = vadd.f32 0.0, %v1020
      %v1022 = vpop.f32.mrf.mxu0
      %1023 = vmatprep.mubr.f32.mxu0 0.0
      %1024 = vmatmul.mubr.f32.gmra.mxu0 %v791
      %v1025 = vpop.f32.mrf.mxu0
      %v1026 = vadd.f32 0.0, %v1025
      %v1027 = vpop.f32.mrf.mxu0
      %1028 = vmatprep.mubr.f32.mxu0 0.0
      %1029 = vmatmul.mubr.f32.gmra.mxu0 %v792
      %v1030 = vpop.f32.mrf.mxu0
      %v1031 = vadd.f32 0.0, %v1030
      %v1032 = vpop.f32.mrf.mxu0
      %1033 = vdwg.mxu0
      %v1034 = vmax.f32 %v876, 0.0
      %v1035 = vmax.f32 %v881, 0.0
      %v1036 = vmax.f32 %v886, 0.0
      %v1037 = vmax.f32 %v891, 0.0
      %v1038 = vmax.f32 %v896, 0.0
      %v1039 = vmax.f32 %v901, 0.0
      %v1040 = vmax.f32 %v906, 0.0
      %v1041 = vmax.f32 %v911, 0.0
      %v1042 = vmax.f32 %v916, 0.0
      %v1043 = vmax.f32 %v921, 0.0
      %v1044 = vmax.f32 %v926, 0.0
      %v1045 = vmax.f32 %v931, 0.0
      %v1046 = vmax.f32 %v936, 0.0
      %v1047 = vmax.f32 %v941, 0.0
      %v1048 = vmax.f32 %v946, 0.0
      %v1049 = vmax.f32 %v951, 0.0
      %v1050 = vmax.f32 %v956, 0.0
      %v1051 = vmax.f32 %v961, 0.0
      %v1052 = vmax.f32 %v966, 0.0
      %v1053 = vmax.f32 %v971, 0.0
      %v1054 = vmax.f32 %v976, 0.0
      %v1055 = vmax.f32 %v981, 0.0
      %v1056 = vmax.f32 %v986, 0.0
      %v1057 = vmax.f32 %v991, 0.0
      %v1058 = vmax.f32 %v996, 0.0
      %v1059 = vmax.f32 %v1001, 0.0
      %v1060 = vmax.f32 %v1006, 0.0
      %v1061 = vmax.f32 %v1011, 0.0
      %v1062 = vmax.f32 %v1016, 0.0
      %v1063 = vmax.f32 %v1021, 0.0
      %v1064 = vmax.f32 %v1026, 0.0
      %v1065 = vmax.f32 %v1031, 0.0
      %v1066 = vld [vmem:[%s1 + $0x180] sm:$0xff]
      %v1067 = vld [vmem:[%s1 + $0x188] sm:$0xff]
      %v1068 = vld [vmem:[%s1 + $0x190] sm:$0xff]
      %v1069 = vld [vmem:[%s1 + $0x198] sm:$0xff]
      %v1070 = vld [vmem:[%s1 + $0x1a0] sm:$0xff]
      %v1071 = vld [vmem:[%s1 + $0x1a8] sm:$0xff]
      %v1072 = vld [vmem:[%s1 + $0x1b0] sm:$0xff]
      %v1073 = vld [vmem:[%s1 + $0x1b8] sm:$0xff]
      %v1074 = vld [vmem:[%s1 + $0x1c0] sm:$0xff]
      %v1075 = vld [vmem:[%s1 + $0x1c8] sm:$0xff]
      %v1076 = vld [vmem:[%s1 + $0x1d0] sm:$0xff]
      %v1077 = vld [vmem:[%s1 + $0x1d8] sm:$0xff]
      %v1078 = vld [vmem:[%s1 + $0x1e0] sm:$0xff]
      %v1079 = vld [vmem:[%s1 + $0x1e8] sm:$0xff]
      %v1080 = vld [vmem:[%s1 + $0x1f0] sm:$0xff]
      %v1081 = vld [vmem:[%s1 + $0x1f8] sm:$0xff]
      %1082 = vmatprep.subr.mxu0 0.0
      %1083 = vmatpush1.msra.mxu0 %v1081
      %1084 = vmatprep.subr.mxu0 0.0
      %1085 = vmatpush1.msra.mxu0 %v1080
      %1086 = vmatprep.subr.mxu0 0.0
      %1087 = vmatpush1.msra.mxu0 %v1079
      %1088 = vmatprep.subr.mxu0 0.0
      %1089 = vmatpush1.msra.mxu0 %v1078
      %1090 = vmatprep.subr.mxu0 0.0
      %1091 = vmatpush1.msra.mxu0 %v1077
      %1092 = vmatprep.subr.mxu0 0.0
      %1093 = vmatpush1.msra.mxu0 %v1076
      %1094 = vmatprep.subr.mxu0 0.0
      %1095 = vmatpush1.msra.mxu0 %v1075
      %1096 = vmatprep.subr.mxu0 0.0
      %1097 = vmatpush1.msra.mxu0 %v1074
      %1098 = vmatprep.subr.mxu0 0.0
      %1099 = vmatpush1.msra.mxu0 %v1073
      %1100 = vmatprep.subr.mxu0 0.0
      %1101 = vmatpush1.msra.mxu0 %v1072
      %1102 = vmatprep.subr.mxu0 0.0
      %1103 = vmatpush1.msra.mxu0 %v1071
      %1104 = vmatprep.subr.mxu0 0.0
      %1105 = vmatpush1.msra.mxu0 %v1070
      %1106 = vmatprep.subr.mxu0 0.0
      %1107 = vmatpush1.msra.mxu0 %v1069
      %1108 = vmatprep.subr.mxu0 0.0
      %1109 = vmatpush1.msra.mxu0 %v1068
      %1110 = vmatprep.subr.mxu0 0.0
      %1111 = vmatpush1.msra.mxu0 %v1067
      %1112 = vmatprep.subr.mxu0 0.0
      %1113 = vmatpush1.msra.mxu0 %v1066
      %1114 = vmatprep.subr.mxu0 0.0
      %1115 = vmatpush2.msra.mxu0 0.0
      %1116 = vmatprep.subr.mxu0 0.0
      %1117 = vmatpush2.msra.mxu0 0.0
      %1118 = vmatprep.subr.mxu0 0.0
      %1119 = vmatpush2.msra.mxu0 0.0
      %1120 = vmatprep.subr.mxu0 0.0
      %1121 = vmatpush2.msra.mxu0 0.0
      %1122 = vmatprep.subr.mxu0 0.0
      %1123 = vmatpush2.msra.mxu0 0.0
      %1124 = vmatprep.subr.mxu0 0.0
      %1125 = vmatpush2.msra.mxu0 0.0
      %1126 = vmatprep.subr.mxu0 0.0
      %1127 = vmatpush2.msra.mxu0 0.0
      %1128 = vmatprep.subr.mxu0 0.0
      %1129 = vmatpush2.msra.mxu0 0.0
      %1130 = vmatprep.subr.mxu0 0.0
      %1131 = vmatpush2.msra.mxu0 0.0
      %1132 = vmatprep.subr.mxu0 0.0
      %1133 = vmatpush2.msra.mxu0 0.0
      %1134 = vmatprep.subr.mxu0 0.0
      %1135 = vmatpush2.msra.mxu0 0.0
      %1136 = vmatprep.subr.mxu0 0.0
      %1137 = vmatpush2.msra.mxu0 0.0
      %1138 = vmatprep.subr.mxu0 0.0
      %1139 = vmatpush2.msra.mxu0 0.0
      %1140 = vmatprep.subr.mxu0 0.0
      %1141 = vmatpush2.msra.mxu0 0.0
      %1142 = vmatprep.subr.mxu0 0.0
      %1143 = vmatpush2.msra.mxu0 0.0
      %1144 = vmatprep.subr.mxu0 0.0
      %1145 = vmatpush2.msra.mxu0 0.0
      %1146 = vmatprep.mubr.f32.mxu0 0.0
      %1147 = vmatmul.mubr.f32.gmra.mxu0 %v1034
      %v1148 = vpop.f32.mrf.mxu0
      %v1149 = vadd.f32 0.0, %v1148
      %v1150 = vpop.f32.mrf.mxu0
      %1151 = vmatprep.mubr.f32.mxu0 0.0
      %1152 = vmatmul.mubr.f32.gmra.mxu0 %v1035
      %v1153 = vpop.f32.mrf.mxu0
      %v1154 = vadd.f32 0.0, %v1153
      %v1155 = vpop.f32.mrf.mxu0
      %1156 = vmatprep.mubr.f32.mxu0 0.0
      %1157 = vmatmul.mubr.f32.gmra.mxu0 %v1036
      %v1158 = vpop.f32.mrf.mxu0
      %v1159 = vadd.f32 0.0, %v1158
      %v1160 = vpop.f32.mrf.mxu0
      %1161 = vmatprep.mubr.f32.mxu0 0.0
      %1162 = vmatmul.mubr.f32.gmra.mxu0 %v1037
      %v1163 = vpop.f32.mrf.mxu0
      %v1164 = vadd.f32 0.0, %v1163
      %v1165 = vpop.f32.mrf.mxu0
      %1166 = vmatprep.mubr.f32.mxu0 0.0
      %1167 = vmatmul.mubr.f32.gmra.mxu0 %v1038
      %v1168 = vpop.f32.mrf.mxu0
      %v1169 = vadd.f32 0.0, %v1168
      %v1170 = vpop.f32.mrf.mxu0
      %1171 = vmatprep.mubr.f32.mxu0 0.0
      %1172 = vmatmul.mubr.f32.gmra.mxu0 %v1039
      %v1173 = vpop.f32.mrf.mxu0
      %v1174 = vadd.f32 0.0, %v1173
      %v1175 = vpop.f32.mrf.mxu0
      %1176 = vmatprep.mubr.f32.mxu0 0.0
      %1177 = vmatmul.mubr.f32.gmra.mxu0 %v1040
      %v1178 = vpop.f32.mrf.mxu0
      %v1179 = vadd.f32 0.0, %v1178
      %v1180 = vpop.f32.mrf.mxu0
      %1181 = vmatprep.mubr.f32.mxu0 0.0
      %1182 = vmatmul.mubr.f32.gmra.mxu0 %v1041
      %v1183 = vpop.f32.mrf.mxu0
      %v1184 = vadd.f32 0.0, %v1183
      %v1185 = vpop.f32.mrf.mxu0
      %1186 = vmatprep.mubr.f32.mxu0 0.0
      %1187 = vmatmul.mubr.f32.gmra.mxu0 %v1042
      %v1188 = vpop.f32.mrf.mxu0
      %v1189 = vadd.f32 0.0, %v1188
      %v1190 = vpop.f32.mrf.mxu0
      %1191 = vmatprep.mubr.f32.mxu0 0.0
      %1192 = vmatmul.mubr.f32.gmra.mxu0 %v1043
      %v1193 = vpop.f32.mrf.mxu0
      %v1194 = vadd.f32 0.0, %v1193
      %v1195 = vpop.f32.mrf.mxu0
      %1196 = vmatprep.mubr.f32.mxu0 0.0
      %1197 = vmatmul.mubr.f32.gmra.mxu0 %v1044
      %v1198 = vpop.f32.mrf.mxu0
      %v1199 = vadd.f32 0.0, %v1198
      %v1200 = vpop.f32.mrf.mxu0
      %1201 = vmatprep.mubr.f32.mxu0 0.0
      %1202 = vmatmul.mubr.f32.gmra.mxu0 %v1045
      %v1203 = vpop.f32.mrf.mxu0
      %v1204 = vadd.f32 0.0, %v1203
      %v1205 = vpop.f32.mrf.mxu0
      %1206 = vmatprep.mubr.f32.mxu0 0.0
      %1207 = vmatmul.mubr.f32.gmra.mxu0 %v1046
      %v1208 = vpop.f32.mrf.mxu0
      %v1209 = vadd.f32 0.0, %v1208
      %v1210 = vpop.f32.mrf.mxu0
      %1211 = vmatprep.mubr.f32.mxu0 0.0
      %1212 = vmatmul.mubr.f32.gmra.mxu0 %v1047
      %v1213 = vpop.f32.mrf.mxu0
      %v1214 = vadd.f32 0.0, %v1213
      %v1215 = vpop.f32.mrf.mxu0
      %1216 = vmatprep.mubr.f32.mxu0 0.0
      %1217 = vmatmul.mubr.f32.gmra.mxu0 %v1048
      %v1218 = vpop.f32.mrf.mxu0
      %v1219 = vadd.f32 0.0, %v1218
      %v1220 = vpop.f32.mrf.mxu0
      %1221 = vmatprep.mubr.f32.mxu0 0.0
      %1222 = vmatmul.mubr.f32.gmra.mxu0 %v1049
      %v1223 = vpop.f32.mrf.mxu0
      %v1224 = vadd.f32 0.0, %v1223
      %v1225 = vpop.f32.mrf.mxu0
      %1226 = vmatprep.mubr.f32.mxu0 0.0
      %1227 = vmatmul.mubr.f32.gmra.mxu0 %v1050
      %v1228 = vpop.f32.mrf.mxu0
      %v1229 = vadd.f32 0.0, %v1228
      %v1230 = vpop.f32.mrf.mxu0
      %1231 = vmatprep.mubr.f32.mxu0 0.0
      %1232 = vmatmul.mubr.f32.gmra.mxu0 %v1051
      %v1233 = vpop.f32.mrf.mxu0
      %v1234 = vadd.f32 0.0, %v1233
      %v1235 = vpop.f32.mrf.mxu0
      %1236 = vmatprep.mubr.f32.mxu0 0.0
      %1237 = vmatmul.mubr.f32.gmra.mxu0 %v1052
      %v1238 = vpop.f32.mrf.mxu0
      %v1239 = vadd.f32 0.0, %v1238
      %v1240 = vpop.f32.mrf.mxu0
      %1241 = vmatprep.mubr.f32.mxu0 0.0
      %1242 = vmatmul.mubr.f32.gmra.mxu0 %v1053
      %v1243 = vpop.f32.mrf.mxu0
      %v1244 = vadd.f32 0.0, %v1243
      %v1245 = vpop.f32.mrf.mxu0
      %1246 = vmatprep.mubr.f32.mxu0 0.0
      %1247 = vmatmul.mubr.f32.gmra.mxu0 %v1054
      %v1248 = vpop.f32.mrf.mxu0
      %v1249 = vadd.f32 0.0, %v1248
      %v1250 = vpop.f32.mrf.mxu0
      %1251 = vmatprep.mubr.f32.mxu0 0.0
      %1252 = vmatmul.mubr.f32.gmra.mxu0 %v1055
      %v1253 = vpop.f32.mrf.mxu0
      %v1254 = vadd.f32 0.0, %v1253
      %v1255 = vpop.f32.mrf.mxu0
      %1256 = vmatprep.mubr.f32.mxu0 0.0
      %1257 = vmatmul.mubr.f32.gmra.mxu0 %v1056
      %v1258 = vpop.f32.mrf.mxu0
      %v1259 = vadd.f32 0.0, %v1258
      %v1260 = vpop.f32.mrf.mxu0
      %1261 = vmatprep.mubr.f32.mxu0 0.0
      %1262 = vmatmul.mubr.f32.gmra.mxu0 %v1057
      %v1263 = vpop.f32.mrf.mxu0
      %v1264 = vadd.f32 0.0, %v1263
      %v1265 = vpop.f32.mrf.mxu0
      %1266 = vmatprep.mubr.f32.mxu0 0.0
      %1267 = vmatmul.mubr.f32.gmra.mxu0 %v1058
      %v1268 = vpop.f32.mrf.mxu0
      %v1269 = vadd.f32 0.0, %v1268
      %v1270 = vpop.f32.mrf.mxu0
      %1271 = vmatprep.mubr.f32.mxu0 0.0
      %1272 = vmatmul.mubr.f32.gmra.mxu0 %v1059
      %v1273 = vpop.f32.mrf.mxu0
      %v1274 = vadd.f32 0.0, %v1273
      %v1275 = vpop.f32.mrf.mxu0
      %1276 = vmatprep.mubr.f32.mxu0 0.0
      %1277 = vmatmul.mubr.f32.gmra.mxu0 %v1060
      %v1278 = vpop.f32.mrf.mxu0
      %v1279 = vadd.f32 0.0, %v1278
      %v1280 = vpop.f32.mrf.mxu0
      %1281 = vmatprep.mubr.f32.mxu0 0.0
      %1282 = vmatmul.mubr.f32.gmra.mxu0 %v1061
      %v1283 = vpop.f32.mrf.mxu0
      %v1284 = vadd.f32 0.0, %v1283
      %v1285 = vpop.f32.mrf.mxu0
      %1286 = vmatprep.mubr.f32.mxu0 0.0
      %1287 = vmatmul.mubr.f32.gmra.mxu0 %v1062
      %v1288 = vpop.f32.mrf.mxu0
      %v1289 = vadd.f32 0.0, %v1288
      %v1290 = vpop.f32.mrf.mxu0
      %1291 = vmatprep.mubr.f32.mxu0 0.0
      %1292 = vmatmul.mubr.f32.gmra.mxu0 %v1063
      %v1293 = vpop.f32.mrf.mxu0
      %v1294 = vadd.f32 0.0, %v1293
      %v1295 = vpop.f32.mrf.mxu0
      %1296 = vmatprep.mubr.f32.mxu0 0.0
      %1297 = vmatmul.mubr.f32.gmra.mxu0 %v1064
      %v1298 = vpop.f32.mrf.mxu0
      %v1299 = vadd.f32 0.0, %v1298
      %v1300 = vpop.f32.mrf.mxu0
      %1301 = vmatprep.mubr.f32.mxu0 0.0
      %1302 = vmatmul.mubr.f32.gmra.mxu0 %v1065
      %v1303 = vpop.f32.mrf.mxu0
      %v1304 = vadd.f32 0.0, %v1303
      %v1305 = vpop.f32.mrf.mxu0
      %1306 = vdwg.mxu0
      %v1307 = vmax.f32 %v1149, 0.0
      %v1308 = vmax.f32 %v1154, 0.0
      %v1309 = vmax.f32 %v1159, 0.0
      %v1310 = vmax.f32 %v1164, 0.0
      %v1311 = vmax.f32 %v1169, 0.0
      %v1312 = vmax.f32 %v1174, 0.0
      %v1313 = vmax.f32 %v1179, 0.0
      %v1314 = vmax.f32 %v1184, 0.0
      %v1315 = vmax.f32 %v1189, 0.0
      %v1316 = vmax.f32 %v1194, 0.0
      %v1317 = vmax.f32 %v1199, 0.0
      %v1318 = vmax.f32 %v1204, 0.0
      %v1319 = vmax.f32 %v1209, 0.0
      %v1320 = vmax.f32 %v1214, 0.0
      %v1321 = vmax.f32 %v1219, 0.0
      %v1322 = vmax.f32 %v1224, 0.0
      %v1323 = vmax.f32 %v1229, 0.0
      %v1324 = vmax.f32 %v1234, 0.0
      %v1325 = vmax.f32 %v1239, 0.0
      %v1326 = vmax.f32 %v1244, 0.0
      %v1327 = vmax.f32 %v1249, 0.0
      %v1328 = vmax.f32 %v1254, 0.0
      %v1329 = vmax.f32 %v1259, 0.0
      %v1330 = vmax.f32 %v1264, 0.0
      %v1331 = vmax.f32 %v1269, 0.0
      %v1332 = vmax.f32 %v1274, 0.0
      %v1333 = vmax.f32 %v1279, 0.0
      %v1334 = vmax.f32 %v1284, 0.0
      %v1335 = vmax.f32 %v1289, 0.0
      %v1336 = vmax.f32 %v1294, 0.0
      %v1337 = vmax.f32 %v1299, 0.0
      %v1338 = vmax.f32 %v1304, 0.0
      %v1339 = vld [vmem:[%s1 + $0x200] sm:$0xff]
      %v1340 = vld [vmem:[%s1 + $0x208] sm:$0xff]
      %v1341 = vld [vmem:[%s1 + $0x210] sm:$0xff]
      %v1342 = vld [vmem:[%s1 + $0x218] sm:$0xff]
      %v1343 = vld [vmem:[%s1 + $0x220] sm:$0xff]
      %v1344 = vld [vmem:[%s1 + $0x228] sm:$0xff]
      %v1345 = vld [vmem:[%s1 + $0x230] sm:$0xff]
      %v1346 = vld [vmem:[%s1 + $0x238] sm:$0xff]
      %v1347 = vld [vmem:[%s1 + $0x240] sm:$0xff]
      %v1348 = vld [vmem:[%s1 + $0x248] sm:$0xff]
      %v1349 = vld [vmem:[%s1 + $0x250] sm:$0xff]
      %v1350 = vld [vmem:[%s1 + $0x258] sm:$0xff]
      %v1351 = vld [vmem:[%s1 + $0x260] sm:$0xff]
      %v1352 = vld [vmem:[%s1 + $0x268] sm:$0xff]
      %v1353 = vld [vmem:[%s1 + $0x270] sm:$0xff]
      %v1354 = vld [vmem:[%s1 + $0x278] sm:$0xff]
      %1355 = vmatprep.subr.mxu0 0.0
      %1356 = vmatpush1.msra.mxu0 %v1354
      %1357 = vmatprep.subr.mxu0 0.0
      %1358 = vmatpush1.msra.mxu0 %v1353
      %1359 = vmatprep.subr.mxu0 0.0
      %1360 = vmatpush1.msra.mxu0 %v1352
      %1361 = vmatprep.subr.mxu0 0.0
      %1362 = vmatpush1.msra.mxu0 %v1351
      %1363 = vmatprep.subr.mxu0 0.0
      %1364 = vmatpush1.msra.mxu0 %v1350
      %1365 = vmatprep.subr.mxu0 0.0
      %1366 = vmatpush1.msra.mxu0 %v1349
      %1367 = vmatprep.subr.mxu0 0.0
      %1368 = vmatpush1.msra.mxu0 %v1348
      %1369 = vmatprep.subr.mxu0 0.0
      %1370 = vmatpush1.msra.mxu0 %v1347
      %1371 = vmatprep.subr.mxu0 0.0
      %1372 = vmatpush1.msra.mxu0 %v1346
      %1373 = vmatprep.subr.mxu0 0.0
      %1374 = vmatpush1.msra.mxu0 %v1345
      %1375 = vmatprep.subr.mxu0 0.0
      %1376 = vmatpush1.msra.mxu0 %v1344
      %1377 = vmatprep.subr.mxu0 0.0
      %1378 = vmatpush1.msra.mxu0 %v1343
      %1379 = vmatprep.subr.mxu0 0.0
      %1380 = vmatpush1.msra.mxu0 %v1342
      %1381 = vmatprep.subr.mxu0 0.0
      %1382 = vmatpush1.msra.mxu0 %v1341
      %1383 = vmatprep.subr.mxu0 0.0
      %1384 = vmatpush1.msra.mxu0 %v1340
      %1385 = vmatprep.subr.mxu0 0.0
      %1386 = vmatpush1.msra.mxu0 %v1339
      %1387 = vmatprep.subr.mxu0 0.0
      %1388 = vmatpush2.msra.mxu0 0.0
      %1389 = vmatprep.subr.mxu0 0.0
      %1390 = vmatpush2.msra.mxu0 0.0
      %1391 = vmatprep.subr.mxu0 0.0
      %1392 = vmatpush2.msra.mxu0 0.0
      %1393 = vmatprep.subr.mxu0 0.0
      %1394 = vmatpush2.msra.mxu0 0.0
      %1395 = vmatprep.subr.mxu0 0.0
      %1396 = vmatpush2.msra.mxu0 0.0
      %1397 = vmatprep.subr.mxu0 0.0
      %1398 = vmatpush2.msra.mxu0 0.0
      %1399 = vmatprep.subr.mxu0 0.0
      %1400 = vmatpush2.msra.mxu0 0.0
      %1401 = vmatprep.subr.mxu0 0.0
      %1402 = vmatpush2.msra.mxu0 0.0
      %1403 = vmatprep.subr.mxu0 0.0
      %1404 = vmatpush2.msra.mxu0 0.0
      %1405 = vmatprep.subr.mxu0 0.0
      %1406 = vmatpush2.msra.mxu0 0.0
      %1407 = vmatprep.subr.mxu0 0.0
      %1408 = vmatpush2.msra.mxu0 0.0
      %1409 = vmatprep.subr.mxu0 0.0
      %1410 = vmatpush2.msra.mxu0 0.0
      %1411 = vmatprep.subr.mxu0 0.0
      %1412 = vmatpush2.msra.mxu0 0.0
      %1413 = vmatprep.subr.mxu0 0.0
      %1414 = vmatpush2.msra.mxu0 0.0
      %1415 = vmatprep.subr.mxu0 0.0
      %1416 = vmatpush2.msra.mxu0 0.0
      %1417 = vmatprep.subr.mxu0 0.0
      %1418 = vmatpush2.msra.mxu0 0.0
      %1419 = vmatprep.mubr.f32.mxu0 0.0
      %1420 = vmatmul.mubr.f32.gmra.mxu0 %v1307
      %v1421 = vpop.f32.mrf.mxu0
      %v1422 = vadd.f32 0.0, %v1421
      %v1423 = vpop.f32.mrf.mxu0
      %1424 = vmatprep.mubr.f32.mxu0 0.0
      %1425 = vmatmul.mubr.f32.gmra.mxu0 %v1308
      %v1426 = vpop.f32.mrf.mxu0
      %v1427 = vadd.f32 0.0, %v1426
      %v1428 = vpop.f32.mrf.mxu0
      %1429 = vmatprep.mubr.f32.mxu0 0.0
      %1430 = vmatmul.mubr.f32.gmra.mxu0 %v1309
      %v1431 = vpop.f32.mrf.mxu0
      %v1432 = vadd.f32 0.0, %v1431
      %v1433 = vpop.f32.mrf.mxu0
      %1434 = vmatprep.mubr.f32.mxu0 0.0
      %1435 = vmatmul.mubr.f32.gmra.mxu0 %v1310
      %v1436 = vpop.f32.mrf.mxu0
      %v1437 = vadd.f32 0.0, %v1436
      %v1438 = vpop.f32.mrf.mxu0
      %1439 = vmatprep.mubr.f32.mxu0 0.0
      %1440 = vmatmul.mubr.f32.gmra.mxu0 %v1311
      %v1441 = vpop.f32.mrf.mxu0
      %v1442 = vadd.f32 0.0, %v1441
      %v1443 = vpop.f32.mrf.mxu0
      %1444 = vmatprep.mubr.f32.mxu0 0.0
      %1445 = vmatmul.mubr.f32.gmra.mxu0 %v1312
      %v1446 = vpop.f32.mrf.mxu0
      %v1447 = vadd.f32 0.0, %v1446
      %v1448 = vpop.f32.mrf.mxu0
      %1449 = vmatprep.mubr.f32.mxu0 0.0
      %1450 = vmatmul.mubr.f32.gmra.mxu0 %v1313
      %v1451 = vpop.f32.mrf.mxu0
      %v1452 = vadd.f32 0.0, %v1451
      %v1453 = vpop.f32.mrf.mxu0
      %1454 = vmatprep.mubr.f32.mxu0 0.0
      %1455 = vmatmul.mubr.f32.gmra.mxu0 %v1314
      %v1456 = vpop.f32.mrf.mxu0
      %v1457 = vadd.f32 0.0, %v1456
      %v1458 = vpop.f32.mrf.mxu0
      %1459 = vmatprep.mubr.f32.mxu0 0.0
      %1460 = vmatmul.mubr.f32.gmra.mxu0 %v1315
      %v1461 = vpop.f32.mrf.mxu0
      %v1462 = vadd.f32 0.0, %v1461
      %v1463 = vpop.f32.mrf.mxu0
      %1464 = vmatprep.mubr.f32.mxu0 0.0
      %1465 = vmatmul.mubr.f32.gmra.mxu0 %v1316
      %v1466 = vpop.f32.mrf.mxu0
      %v1467 = vadd.f32 0.0, %v1466
      %v1468 = vpop.f32.mrf.mxu0
      %1469 = vmatprep.mubr.f32.mxu0 0.0
      %1470 = vmatmul.mubr.f32.gmra.mxu0 %v1317
      %v1471 = vpop.f32.mrf.mxu0
      %v1472 = vadd.f32 0.0, %v1471
      %v1473 = vpop.f32.mrf.mxu0
      %1474 = vmatprep.mubr.f32.mxu0 0.0
      %1475 = vmatmul.mubr.f32.gmra.mxu0 %v1318
      %v1476 = vpop.f32.mrf.mxu0
      %v1477 = vadd.f32 0.0, %v1476
      %v1478 = vpop.f32.mrf.mxu0
      %1479 = vmatprep.mubr.f32.mxu0 0.0
      %1480 = vmatmul.mubr.f32.gmra.mxu0 %v1319
      %v1481 = vpop.f32.mrf.mxu0
      %v1482 = vadd.f32 0.0, %v1481
      %v1483 = vpop.f32.mrf.mxu0
      %1484 = vmatprep.mubr.f32.mxu0 0.0
      %1485 = vmatmul.mubr.f32.gmra.mxu0 %v1320
      %v1486 = vpop.f32.mrf.mxu0
      %v1487 = vadd.f32 0.0, %v1486
      %v1488 = vpop.f32.mrf.mxu0
      %1489 = vmatprep.mubr.f32.mxu0 0.0
      %1490 = vmatmul.mubr.f32.gmra.mxu0 %v1321
      %v1491 = vpop.f32.mrf.mxu0
      %v1492 = vadd.f32 0.0, %v1491
      %v1493 = vpop.f32.mrf.mxu0
      %1494 = vmatprep.mubr.f32.mxu0 0.0
      %1495 = vmatmul.mubr.f32.gmra.mxu0 %v1322
      %v1496 = vpop.f32.mrf.mxu0
      %v1497 = vadd.f32 0.0, %v1496
      %v1498 = vpop.f32.mrf.mxu0
      %1499 = vmatprep.mubr.f32.mxu0 0.0
      %1500 = vmatmul.mubr.f32.gmra.mxu0 %v1323
      %v1501 = vpop.f32.mrf.mxu0
      %v1502 = vadd.f32 0.0, %v1501
      %v1503 = vpop.f32.mrf.mxu0
      %1504 = vmatprep.mubr.f32.mxu0 0.0
      %1505 = vmatmul.mubr.f32.gmra.mxu0 %v1324
      %v1506 = vpop.f32.mrf.mxu0
      %v1507 = vadd.f32 0.0, %v1506
      %v1508 = vpop.f32.mrf.mxu0
      %1509 = vmatprep.mubr.f32.mxu0 0.0
      %1510 = vmatmul.mubr.f32.gmra.mxu0 %v1325
      %v1511 = vpop.f32.mrf.mxu0
      %v1512 = vadd.f32 0.0, %v1511
      %v1513 = vpop.f32.mrf.mxu0
      %1514 = vmatprep.mubr.f32.mxu0 0.0
      %1515 = vmatmul.mubr.f32.gmra.mxu0 %v1326
      %v1516 = vpop.f32.mrf.mxu0
      %v1517 = vadd.f32 0.0, %v1516
      %v1518 = vpop.f32.mrf.mxu0
      %1519 = vmatprep.mubr.f32.mxu0 0.0
      %1520 = vmatmul.mubr.f32.gmra.mxu0 %v1327
      %v1521 = vpop.f32.mrf.mxu0
      %v1522 = vadd.f32 0.0, %v1521
      %v1523 = vpop.f32.mrf.mxu0
      %1524 = vmatprep.mubr.f32.mxu0 0.0
      %1525 = vmatmul.mubr.f32.gmra.mxu0 %v1328
      %v1526 = vpop.f32.mrf.mxu0
      %v1527 = vadd.f32 0.0, %v1526
      %v1528 = vpop.f32.mrf.mxu0
      %1529 = vmatprep.mubr.f32.mxu0 0.0
      %1530 = vmatmul.mubr.f32.gmra.mxu0 %v1329
      %v1531 = vpop.f32.mrf.mxu0
      %v1532 = vadd.f32 0.0, %v1531
      %v1533 = vpop.f32.mrf.mxu0
      %1534 = vmatprep.mubr.f32.mxu0 0.0
      %1535 = vmatmul.mubr.f32.gmra.mxu0 %v1330
      %v1536 = vpop.f32.mrf.mxu0
      %v1537 = vadd.f32 0.0, %v1536
      %v1538 = vpop.f32.mrf.mxu0
      %1539 = vmatprep.mubr.f32.mxu0 0.0
      %1540 = vmatmul.mubr.f32.gmra.mxu0 %v1331
      %v1541 = vpop.f32.mrf.mxu0
      %v1542 = vadd.f32 0.0, %v1541
      %v1543 = vpop.f32.mrf.mxu0
      %1544 = vmatprep.mubr.f32.mxu0 0.0
      %1545 = vmatmul.mubr.f32.gmra.mxu0 %v1332
      %v1546 = vpop.f32.mrf.mxu0
      %v1547 = vadd.f32 0.0, %v1546
      %v1548 = vpop.f32.mrf.mxu0
      %1549 = vmatprep.mubr.f32.mxu0 0.0
      %1550 = vmatmul.mubr.f32.gmra.mxu0 %v1333
      %v1551 = vpop.f32.mrf.mxu0
      %v1552 = vadd.f32 0.0, %v1551
      %v1553 = vpop.f32.mrf.mxu0
      %1554 = vmatprep.mubr.f32.mxu0 0.0
      %1555 = vmatmul.mubr.f32.gmra.mxu0 %v1334
      %v1556 = vpop.f32.mrf.mxu0
      %v1557 = vadd.f32 0.0, %v1556
      %v1558 = vpop.f32.mrf.mxu0
      %1559 = vmatprep.mubr.f32.mxu0 0.0
      %1560 = vmatmul.mubr.f32.gmra.mxu0 %v1335
      %v1561 = vpop.f32.mrf.mxu0
      %v1562 = vadd.f32 0.0, %v1561
      %v1563 = vpop.f32.mrf.mxu0
      %1564 = vmatprep.mubr.f32.mxu0 0.0
      %1565 = vmatmul.mubr.f32.gmra.mxu0 %v1336
      %v1566 = vpop.f32.mrf.mxu0
      %v1567 = vadd.f32 0.0, %v1566
      %v1568 = vpop.f32.mrf.mxu0
      %1569 = vmatprep.mubr.f32.mxu0 0.0
      %1570 = vmatmul.mubr.f32.gmra.mxu0 %v1337
      %v1571 = vpop.f32.mrf.mxu0
      %v1572 = vadd.f32 0.0, %v1571
      %v1573 = vpop.f32.mrf.mxu0
      %1574 = vmatprep.mubr.f32.mxu0 0.0
      %1575 = vmatmul.mubr.f32.gmra.mxu0 %v1338
      %v1576 = vpop.f32.mrf.mxu0
      %v1577 = vadd.f32 0.0, %v1576
      %v1578 = vpop.f32.mrf.mxu0
      %1579 = vdwg.mxu0
      %v1580 = vmax.f32 %v1422, 0.0
      %v1581 = vmax.f32 %v1427, 0.0
      %v1582 = vmax.f32 %v1432, 0.0
      %v1583 = vmax.f32 %v1437, 0.0
      %v1584 = vmax.f32 %v1442, 0.0
      %v1585 = vmax.f32 %v1447, 0.0
      %v1586 = vmax.f32 %v1452, 0.0
      %v1587 = vmax.f32 %v1457, 0.0
      %v1588 = vmax.f32 %v1462, 0.0
      %v1589 = vmax.f32 %v1467, 0.0
      %v1590 = vmax.f32 %v1472, 0.0
      %v1591 = vmax.f32 %v1477, 0.0
      %v1592 = vmax.f32 %v1482, 0.0
      %v1593 = vmax.f32 %v1487, 0.0
      %v1594 = vmax.f32 %v1492, 0.0
      %v1595 = vmax.f32 %v1497, 0.0
      %v1596 = vmax.f32 %v1502, 0.0
      %v1597 = vmax.f32 %v1507, 0.0
      %v1598 = vmax.f32 %v1512, 0.0
      %v1599 = vmax.f32 %v1517, 0.0
      %v1600 = vmax.f32 %v1522, 0.0
      %v1601 = vmax.f32 %v1527, 0.0
      %v1602 = vmax.f32 %v1532, 0.0
      %v1603 = vmax.f32 %v1537, 0.0
      %v1604 = vmax.f32 %v1542, 0.0
      %v1605 = vmax.f32 %v1547, 0.0
      %v1606 = vmax.f32 %v1552, 0.0
      %v1607 = vmax.f32 %v1557, 0.0
      %v1608 = vmax.f32 %v1562, 0.0
      %v1609 = vmax.f32 %v1567, 0.0
      %v1610 = vmax.f32 %v1572, 0.0
      %v1611 = vmax.f32 %v1577, 0.0
      %v1612 = vld [vmem:[%s1 + $0x280] sm:$0xff]
      %v1613 = vld [vmem:[%s1 + $0x288] sm:$0xff]
      %v1614 = vld [vmem:[%s1 + $0x290] sm:$0xff]
      %v1615 = vld [vmem:[%s1 + $0x298] sm:$0xff]
      %v1616 = vld [vmem:[%s1 + $0x2a0] sm:$0xff]
      %v1617 = vld [vmem:[%s1 + $0x2a8] sm:$0xff]
      %v1618 = vld [vmem:[%s1 + $0x2b0] sm:$0xff]
      %v1619 = vld [vmem:[%s1 + $0x2b8] sm:$0xff]
      %v1620 = vld [vmem:[%s1 + $0x2c0] sm:$0xff]
      %v1621 = vld [vmem:[%s1 + $0x2c8] sm:$0xff]
      %v1622 = vld [vmem:[%s1 + $0x2d0] sm:$0xff]
      %v1623 = vld [vmem:[%s1 + $0x2d8] sm:$0xff]
      %v1624 = vld [vmem:[%s1 + $0x2e0] sm:$0xff]
      %v1625 = vld [vmem:[%s1 + $0x2e8] sm:$0xff]
      %v1626 = vld [vmem:[%s1 + $0x2f0] sm:$0xff]
      %v1627 = vld [vmem:[%s1 + $0x2f8] sm:$0xff]
      %1628 = vmatprep.subr.mxu0 0.0
      %1629 = vmatpush1.msra.mxu0 %v1627
      %1630 = vmatprep.subr.mxu0 0.0
      %1631 = vmatpush1.msra.mxu0 %v1626
      %1632 = vmatprep.subr.mxu0 0.0
      %1633 = vmatpush1.msra.mxu0 %v1625
      %1634 = vmatprep.subr.mxu0 0.0
      %1635 = vmatpush1.msra.mxu0 %v1624
      %1636 = vmatprep.subr.mxu0 0.0
      %1637 = vmatpush1.msra.mxu0 %v1623
      %1638 = vmatprep.subr.mxu0 0.0
      %1639 = vmatpush1.msra.mxu0 %v1622
      %1640 = vmatprep.subr.mxu0 0.0
      %1641 = vmatpush1.msra.mxu0 %v1621
      %1642 = vmatprep.subr.mxu0 0.0
      %1643 = vmatpush1.msra.mxu0 %v1620
      %1644 = vmatprep.subr.mxu0 0.0
      %1645 = vmatpush1.msra.mxu0 %v1619
      %1646 = vmatprep.subr.mxu0 0.0
      %1647 = vmatpush1.msra.mxu0 %v1618
      %1648 = vmatprep.subr.mxu0 0.0
      %1649 = vmatpush1.msra.mxu0 %v1617
      %1650 = vmatprep.subr.mxu0 0.0
      %1651 = vmatpush1.msra.mxu0 %v1616
      %1652 = vmatprep.subr.mxu0 0.0
      %1653 = vmatpush1.msra.mxu0 %v1615
      %1654 = vmatprep.subr.mxu0 0.0
      %1655 = vmatpush1.msra.mxu0 %v1614
      %1656 = vmatprep.subr.mxu0 0.0
      %1657 = vmatpush1.msra.mxu0 %v1613
      %1658 = vmatprep.subr.mxu0 0.0
      %1659 = vmatpush1.msra.mxu0 %v1612
      %1660 = vmatprep.subr.mxu0 0.0
      %1661 = vmatpush2.msra.mxu0 0.0
      %1662 = vmatprep.subr.mxu0 0.0
      %1663 = vmatpush2.msra.mxu0 0.0
      %1664 = vmatprep.subr.mxu0 0.0
      %1665 = vmatpush2.msra.mxu0 0.0
      %1666 = vmatprep.subr.mxu0 0.0
      %1667 = vmatpush2.msra.mxu0 0.0
      %1668 = vmatprep.subr.mxu0 0.0
      %1669 = vmatpush2.msra.mxu0 0.0
      %1670 = vmatprep.subr.mxu0 0.0
      %1671 = vmatpush2.msra.mxu0 0.0
      %1672 = vmatprep.subr.mxu0 0.0
      %1673 = vmatpush2.msra.mxu0 0.0
      %1674 = vmatprep.subr.mxu0 0.0
      %1675 = vmatpush2.msra.mxu0 0.0
      %1676 = vmatprep.subr.mxu0 0.0
      %1677 = vmatpush2.msra.mxu0 0.0
      %1678 = vmatprep.subr.mxu0 0.0
      %1679 = vmatpush2.msra.mxu0 0.0
      %1680 = vmatprep.subr.mxu0 0.0
      %1681 = vmatpush2.msra.mxu0 0.0
      %1682 = vmatprep.subr.mxu0 0.0
      %1683 = vmatpush2.msra.mxu0 0.0
      %1684 = vmatprep.subr.mxu0 0.0
      %1685 = vmatpush2.msra.mxu0 0.0
      %1686 = vmatprep.subr.mxu0 0.0
      %1687 = vmatpush2.msra.mxu0 0.0
      %1688 = vmatprep.subr.mxu0 0.0
      %1689 = vmatpush2.msra.mxu0 0.0
      %1690 = vmatprep.subr.mxu0 0.0
      %1691 = vmatpush2.msra.mxu0 0.0
      %1692 = vmatprep.mubr.f32.mxu0 0.0
      %1693 = vmatmul.mubr.f32.gmra.mxu0 %v1580
      %v1694 = vpop.f32.mrf.mxu0
      %v1695 = vadd.f32 0.0, %v1694
      %v1696 = vpop.f32.mrf.mxu0
      %1697 = vmatprep.mubr.f32.mxu0 0.0
      %1698 = vmatmul.mubr.f32.gmra.mxu0 %v1581
      %v1699 = vpop.f32.mrf.mxu0
      %v1700 = vadd.f32 0.0, %v1699
      %v1701 = vpop.f32.mrf.mxu0
      %1702 = vmatprep.mubr.f32.mxu0 0.0
      %1703 = vmatmul.mubr.f32.gmra.mxu0 %v1582
      %v1704 = vpop.f32.mrf.mxu0
      %v1705 = vadd.f32 0.0, %v1704
      %v1706 = vpop.f32.mrf.mxu0
      %1707 = vmatprep.mubr.f32.mxu0 0.0
      %1708 = vmatmul.mubr.f32.gmra.mxu0 %v1583
      %v1709 = vpop.f32.mrf.mxu0
      %v1710 = vadd.f32 0.0, %v1709
      %v1711 = vpop.f32.mrf.mxu0
      %1712 = vmatprep.mubr.f32.mxu0 0.0
      %1713 = vmatmul.mubr.f32.gmra.mxu0 %v1584
      %v1714 = vpop.f32.mrf.mxu0
      %v1715 = vadd.f32 0.0, %v1714
      %v1716 = vpop.f32.mrf.mxu0
      %1717 = vmatprep.mubr.f32.mxu0 0.0
      %1718 = vmatmul.mubr.f32.gmra.mxu0 %v1585
      %v1719 = vpop.f32.mrf.mxu0
      %v1720 = vadd.f32 0.0, %v1719
      %v1721 = vpop.f32.mrf.mxu0
      %1722 = vmatprep.mubr.f32.mxu0 0.0
      %1723 = vmatmul.mubr.f32.gmra.mxu0 %v1586
      %v1724 = vpop.f32.mrf.mxu0
      %v1725 = vadd.f32 0.0, %v1724
      %v1726 = vpop.f32.mrf.mxu0
      %1727 = vmatprep.mubr.f32.mxu0 0.0
      %1728 = vmatmul.mubr.f32.gmra.mxu0 %v1587
      %v1729 = vpop.f32.mrf.mxu0
      %v1730 = vadd.f32 0.0, %v1729
      %v1731 = vpop.f32.mrf.mxu0
      %1732 = vmatprep.mubr.f32.mxu0 0.0
      %1733 = vmatmul.mubr.f32.gmra.mxu0 %v1588
      %v1734 = vpop.f32.mrf.mxu0
      %v1735 = vadd.f32 0.0, %v1734
      %v1736 = vpop.f32.mrf.mxu0
      %1737 = vmatprep.mubr.f32.mxu0 0.0
      %1738 = vmatmul.mubr.f32.gmra.mxu0 %v1589
      %v1739 = vpop.f32.mrf.mxu0
      %v1740 = vadd.f32 0.0, %v1739
      %v1741 = vpop.f32.mrf.mxu0
      %1742 = vmatprep.mubr.f32.mxu0 0.0
      %1743 = vmatmul.mubr.f32.gmra.mxu0 %v1590
      %v1744 = vpop.f32.mrf.mxu0
      %v1745 = vadd.f32 0.0, %v1744
      %v1746 = vpop.f32.mrf.mxu0
      %1747 = vmatprep.mubr.f32.mxu0 0.0
      %1748 = vmatmul.mubr.f32.gmra.mxu0 %v1591
      %v1749 = vpop.f32.mrf.mxu0
      %v1750 = vadd.f32 0.0, %v1749
      %v1751 = vpop.f32.mrf.mxu0
      %1752 = vmatprep.mubr.f32.mxu0 0.0
      %1753 = vmatmul.mubr.f32.gmra.mxu0 %v1592
      %v1754 = vpop.f32.mrf.mxu0
      %v1755 = vadd.f32 0.0, %v1754
      %v1756 = vpop.f32.mrf.mxu0
      %1757 = vmatprep.mubr.f32.mxu0 0.0
      %1758 = vmatmul.mubr.f32.gmra.mxu0 %v1593
      %v1759 = vpop.f32.mrf.mxu0
      %v1760 = vadd.f32 0.0, %v1759
      %v1761 = vpop.f32.mrf.mxu0
      %1762 = vmatprep.mubr.f32.mxu0 0.0
      %1763 = vmatmul.mubr.f32.gmra.mxu0 %v1594
      %v1764 = vpop.f32.mrf.mxu0
      %v1765 = vadd.f32 0.0, %v1764
      %v1766 = vpop.f32.mrf.mxu0
      %1767 = vmatprep.mubr.f32.mxu0 0.0
      %1768 = vmatmul.mubr.f32.gmra.mxu0 %v1595
      %v1769 = vpop.f32.mrf.mxu0
      %v1770 = vadd.f32 0.0, %v1769
      %v1771 = vpop.f32.mrf.mxu0
      %1772 = vmatprep.mubr.f32.mxu0 0.0
      %1773 = vmatmul.mubr.f32.gmra.mxu0 %v1596
      %v1774 = vpop.f32.mrf.mxu0
      %v1775 = vadd.f32 0.0, %v1774
      %v1776 = vpop.f32.mrf.mxu0
      %1777 = vmatprep.mubr.f32.mxu0 0.0
      %1778 = vmatmul.mubr.f32.gmra.mxu0 %v1597
      %v1779 = vpop.f32.mrf.mxu0
      %v1780 = vadd.f32 0.0, %v1779
      %v1781 = vpop.f32.mrf.mxu0
      %1782 = vmatprep.mubr.f32.mxu0 0.0
      %1783 = vmatmul.mubr.f32.gmra.mxu0 %v1598
      %v1784 = vpop.f32.mrf.mxu0
      %v1785 = vadd.f32 0.0, %v1784
      %v1786 = vpop.f32.mrf.mxu0
      %1787 = vmatprep.mubr.f32.mxu0 0.0
      %1788 = vmatmul.mubr.f32.gmra.mxu0 %v1599
      %v1789 = vpop.f32.mrf.mxu0
      %v1790 = vadd.f32 0.0, %v1789
      %v1791 = vpop.f32.mrf.mxu0
      %1792 = vmatprep.mubr.f32.mxu0 0.0
      %1793 = vmatmul.mubr.f32.gmra.mxu0 %v1600
      %v1794 = vpop.f32.mrf.mxu0
      %v1795 = vadd.f32 0.0, %v1794
      %v1796 = vpop.f32.mrf.mxu0
      %1797 = vmatprep.mubr.f32.mxu0 0.0
      %1798 = vmatmul.mubr.f32.gmra.mxu0 %v1601
      %v1799 = vpop.f32.mrf.mxu0
      %v1800 = vadd.f32 0.0, %v1799
      %v1801 = vpop.f32.mrf.mxu0
      %1802 = vmatprep.mubr.f32.mxu0 0.0
      %1803 = vmatmul.mubr.f32.gmra.mxu0 %v1602
      %v1804 = vpop.f32.mrf.mxu0
      %v1805 = vadd.f32 0.0, %v1804
      %v1806 = vpop.f32.mrf.mxu0
      %1807 = vmatprep.mubr.f32.mxu0 0.0
      %1808 = vmatmul.mubr.f32.gmra.mxu0 %v1603
      %v1809 = vpop.f32.mrf.mxu0
      %v1810 = vadd.f32 0.0, %v1809
      %v1811 = vpop.f32.mrf.mxu0
      %1812 = vmatprep.mubr.f32.mxu0 0.0
      %1813 = vmatmul.mubr.f32.gmra.mxu0 %v1604
      %v1814 = vpop.f32.mrf.mxu0
      %v1815 = vadd.f32 0.0, %v1814
      %v1816 = vpop.f32.mrf.mxu0
      %1817 = vmatprep.mubr.f32.mxu0 0.0
      %1818 = vmatmul.mubr.f32.gmra.mxu0 %v1605
      %v1819 = vpop.f32.mrf.mxu0
      %v1820 = vadd.f32 0.0, %v1819
      %v1821 = vpop.f32.mrf.mxu0
      %1822 = vmatprep.mubr.f32.mxu0 0.0
      %1823 = vmatmul.mubr.f32.gmra.mxu0 %v1606
      %v1824 = vpop.f32.mrf.mxu0
      %v1825 = vadd.f32 0.0, %v1824
      %v1826 = vpop.f32.mrf.mxu0
      %1827 = vmatprep.mubr.f32.mxu0 0.0
      %1828 = vmatmul.mubr.f32.gmra.mxu0 %v1607
      %v1829 = vpop.f32.mrf.mxu0
      %v1830 = vadd.f32 0.0, %v1829
      %v1831 = vpop.f32.mrf.mxu0
      %1832 = vmatprep.mubr.f32.mxu0 0.0
      %1833 = vmatmul.mubr.f32.gmra.mxu0 %v1608
      %v1834 = vpop.f32.mrf.mxu0
      %v1835 = vadd.f32 0.0, %v1834
      %v1836 = vpop.f32.mrf.mxu0
      %1837 = vmatprep.mubr.f32.mxu0 0.0
      %1838 = vmatmul.mubr.f32.gmra.mxu0 %v1609
      %v1839 = vpop.f32.mrf.mxu0
      %v1840 = vadd.f32 0.0, %v1839
      %v1841 = vpop.f32.mrf.mxu0
      %1842 = vmatprep.mubr.f32.mxu0 0.0
      %1843 = vmatmul.mubr.f32.gmra.mxu0 %v1610
      %v1844 = vpop.f32.mrf.mxu0
      %v1845 = vadd.f32 0.0, %v1844
      %v1846 = vpop.f32.mrf.mxu0
      %1847 = vmatprep.mubr.f32.mxu0 0.0
      %1848 = vmatmul.mubr.f32.gmra.mxu0 %v1611
      %v1849 = vpop.f32.mrf.mxu0
      %v1850 = vadd.f32 0.0, %v1849
      %v1851 = vpop.f32.mrf.mxu0
      %1852 = vdwg.mxu0
      %v1853 = vmax.f32 %v1695, 0.0
      %v1854 = vmax.f32 %v1700, 0.0
      %v1855 = vmax.f32 %v1705, 0.0
      %v1856 = vmax.f32 %v1710, 0.0
      %v1857 = vmax.f32 %v1715, 0.0
      %v1858 = vmax.f32 %v1720, 0.0
      %v1859 = vmax.f32 %v1725, 0.0
      %v1860 = vmax.f32 %v1730, 0.0
      %v1861 = vmax.f32 %v1735, 0.0
      %v1862 = vmax.f32 %v1740, 0.0
      %v1863 = vmax.f32 %v1745, 0.0
      %v1864 = vmax.f32 %v1750, 0.0
      %v1865 = vmax.f32 %v1755, 0.0
      %v1866 = vmax.f32 %v1760, 0.0
      %v1867 = vmax.f32 %v1765, 0.0
      %v1868 = vmax.f32 %v1770, 0.0
      %v1869 = vmax.f32 %v1775, 0.0
      %v1870 = vmax.f32 %v1780, 0.0
      %v1871 = vmax.f32 %v1785, 0.0
      %v1872 = vmax.f32 %v1790, 0.0
      %v1873 = vmax.f32 %v1795, 0.0
      %v1874 = vmax.f32 %v1800, 0.0
      %v1875 = vmax.f32 %v1805, 0.0
      %v1876 = vmax.f32 %v1810, 0.0
      %v1877 = vmax.f32 %v1815, 0.0
      %v1878 = vmax.f32 %v1820, 0.0
      %v1879 = vmax.f32 %v1825, 0.0
      %v1880 = vmax.f32 %v1830, 0.0
      %v1881 = vmax.f32 %v1835, 0.0
      %v1882 = vmax.f32 %v1840, 0.0
      %v1883 = vmax.f32 %v1845, 0.0
      %v1884 = vmax.f32 %v1850, 0.0
      %v1885 = vld [vmem:[%s1 + $0x300] sm:$0xff]
      %v1886 = vld [vmem:[%s1 + $0x308] sm:$0xff]
      %v1887 = vld [vmem:[%s1 + $0x310] sm:$0xff]
      %v1888 = vld [vmem:[%s1 + $0x318] sm:$0xff]
      %v1889 = vld [vmem:[%s1 + $0x320] sm:$0xff]
      %v1890 = vld [vmem:[%s1 + $0x328] sm:$0xff]
      %v1891 = vld [vmem:[%s1 + $0x330] sm:$0xff]
      %v1892 = vld [vmem:[%s1 + $0x338] sm:$0xff]
      %v1893 = vld [vmem:[%s1 + $0x340] sm:$0xff]
      %v1894 = vld [vmem:[%s1 + $0x348] sm:$0xff]
      %v1895 = vld [vmem:[%s1 + $0x350] sm:$0xff]
      %v1896 = vld [vmem:[%s1 + $0x358] sm:$0xff]
      %v1897 = vld [vmem:[%s1 + $0x360] sm:$0xff]
      %v1898 = vld [vmem:[%s1 + $0x368] sm:$0xff]
      %v1899 = vld [vmem:[%s1 + $0x370] sm:$0xff]
      %v1900 = vld [vmem:[%s1 + $0x378] sm:$0xff]
      %1901 = vmatprep.subr.mxu0 0.0
      %1902 = vmatpush1.msra.mxu0 %v1900
      %1903 = vmatprep.subr.mxu0 0.0
      %1904 = vmatpush1.msra.mxu0 %v1899
      %1905 = vmatprep.subr.mxu0 0.0
      %1906 = vmatpush1.msra.mxu0 %v1898
      %1907 = vmatprep.subr.mxu0 0.0
      %1908 = vmatpush1.msra.mxu0 %v1897
      %1909 = vmatprep.subr.mxu0 0.0
      %1910 = vmatpush1.msra.mxu0 %v1896
      %1911 = vmatprep.subr.mxu0 0.0
      %1912 = vmatpush1.msra.mxu0 %v1895
      %1913 = vmatprep.subr.mxu0 0.0
      %1914 = vmatpush1.msra.mxu0 %v1894
      %1915 = vmatprep.subr.mxu0 0.0
      %1916 = vmatpush1.msra.mxu0 %v1893
      %1917 = vmatprep.subr.mxu0 0.0
      %1918 = vmatpush1.msra.mxu0 %v1892
      %1919 = vmatprep.subr.mxu0 0.0
      %1920 = vmatpush1.msra.mxu0 %v1891
      %1921 = vmatprep.subr.mxu0 0.0
      %1922 = vmatpush1.msra.mxu0 %v1890
      %1923 = vmatprep.subr.mxu0 0.0
      %1924 = vmatpush1.msra.mxu0 %v1889
      %1925 = vmatprep.subr.mxu0 0.0
      %1926 = vmatpush1.msra.mxu0 %v1888
      %1927 = vmatprep.subr.mxu0 0.0
      %1928 = vmatpush1.msra.mxu0 %v1887
      %1929 = vmatprep.subr.mxu0 0.0
      %1930 = vmatpush1.msra.mxu0 %v1886
      %1931 = vmatprep.subr.mxu0 0.0
      %1932 = vmatpush1.msra.mxu0 %v1885
      %1933 = vmatprep.subr.mxu0 0.0
      %1934 = vmatpush2.msra.mxu0 0.0
      %1935 = vmatprep.subr.mxu0 0.0
      %1936 = vmatpush2.msra.mxu0 0.0
      %1937 = vmatprep.subr.mxu0 0.0
      %1938 = vmatpush2.msra.mxu0 0.0
      %1939 = vmatprep.subr.mxu0 0.0
      %1940 = vmatpush2.msra.mxu0 0.0
      %1941 = vmatprep.subr.mxu0 0.0
      %1942 = vmatpush2.msra.mxu0 0.0
      %1943 = vmatprep.subr.mxu0 0.0
      %1944 = vmatpush2.msra.mxu0 0.0
      %1945 = vmatprep.subr.mxu0 0.0
      %1946 = vmatpush2.msra.mxu0 0.0
      %1947 = vmatprep.subr.mxu0 0.0
      %1948 = vmatpush2.msra.mxu0 0.0
      %1949 = vmatprep.subr.mxu0 0.0
      %1950 = vmatpush2.msra.mxu0 0.0
      %1951 = vmatprep.subr.mxu0 0.0
      %1952 = vmatpush2.msra.mxu0 0.0
      %1953 = vmatprep.subr.mxu0 0.0
      %1954 = vmatpush2.msra.mxu0 0.0
      %1955 = vmatprep.subr.mxu0 0.0
      %1956 = vmatpush2.msra.mxu0 0.0
      %1957 = vmatprep.subr.mxu0 0.0
      %1958 = vmatpush2.msra.mxu0 0.0
      %1959 = vmatprep.subr.mxu0 0.0
      %1960 = vmatpush2.msra.mxu0 0.0
      %1961 = vmatprep.subr.mxu0 0.0
      %1962 = vmatpush2.msra.mxu0 0.0
      %1963 = vmatprep.subr.mxu0 0.0
      %1964 = vmatpush2.msra.mxu0 0.0
      %1965 = vmatprep.mubr.f32.mxu0 0.0
      %1966 = vmatmul.mubr.f32.gmra.mxu0 %v1853
      %v1967 = vpop.f32.mrf.mxu0
      %v1968 = vadd.f32 0.0, %v1967
      %v1969 = vpop.f32.mrf.mxu0
      %1970 = vmatprep.mubr.f32.mxu0 0.0
      %1971 = vmatmul.mubr.f32.gmra.mxu0 %v1854
      %v1972 = vpop.f32.mrf.mxu0
      %v1973 = vadd.f32 0.0, %v1972
      %v1974 = vpop.f32.mrf.mxu0
      %1975 = vmatprep.mubr.f32.mxu0 0.0
      %1976 = vmatmul.mubr.f32.gmra.mxu0 %v1855
      %v1977 = vpop.f32.mrf.mxu0
      %v1978 = vadd.f32 0.0, %v1977
      %v1979 = vpop.f32.mrf.mxu0
      %1980 = vmatprep.mubr.f32.mxu0 0.0
      %1981 = vmatmul.mubr.f32.gmra.mxu0 %v1856
      %v1982 = vpop.f32.mrf.mxu0
      %v1983 = vadd.f32 0.0, %v1982
      %v1984 = vpop.f32.mrf.mxu0
      %1985 = vmatprep.mubr.f32.mxu0 0.0
      %1986 = vmatmul.mubr.f32.gmra.mxu0 %v1857
      %v1987 = vpop.f32.mrf.mxu0
      %v1988 = vadd.f32 0.0, %v1987
      %v1989 = vpop.f32.mrf.mxu0
      %1990 = vmatprep.mubr.f32.mxu0 0.0
      %1991 = vmatmul.mubr.f32.gmra.mxu0 %v1858
      %v1992 = vpop.f32.mrf.mxu0
      %v1993 = vadd.f32 0.0, %v1992
      %v1994 = vpop.f32.mrf.mxu0
      %1995 = vmatprep.mubr.f32.mxu0 0.0
      %1996 = vmatmul.mubr.f32.gmra.mxu0 %v1859
      %v1997 = vpop.f32.mrf.mxu0
      %v1998 = vadd.f32 0.0, %v1997
      %v1999 = vpop.f32.mrf.mxu0
      %2000 = vmatprep.mubr.f32.mxu0 0.0
      %2001 = vmatmul.mubr.f32.gmra.mxu0 %v1860
      %v2002 = vpop.f32.mrf.mxu0
      %v2003 = vadd.f32 0.0, %v2002
      %v2004 = vpop.f32.mrf.mxu0
      %2005 = vmatprep.mubr.f32.mxu0 0.0
      %2006 = vmatmul.mubr.f32.gmra.mxu0 %v1861
      %v2007 = vpop.f32.mrf.mxu0
      %v2008 = vadd.f32 0.0, %v2007
      %v2009 = vpop.f32.mrf.mxu0
      %2010 = vmatprep.mubr.f32.mxu0 0.0
      %2011 = vmatmul.mubr.f32.gmra.mxu0 %v1862
      %v2012 = vpop.f32.mrf.mxu0
      %v2013 = vadd.f32 0.0, %v2012
      %v2014 = vpop.f32.mrf.mxu0
      %2015 = vmatprep.mubr.f32.mxu0 0.0
      %2016 = vmatmul.mubr.f32.gmra.mxu0 %v1863
      %v2017 = vpop.f32.mrf.mxu0
      %v2018 = vadd.f32 0.0, %v2017
      %v2019 = vpop.f32.mrf.mxu0
      %2020 = vmatprep.mubr.f32.mxu0 0.0
      %2021 = vmatmul.mubr.f32.gmra.mxu0 %v1864
      %v2022 = vpop.f32.mrf.mxu0
      %v2023 = vadd.f32 0.0, %v2022
      %v2024 = vpop.f32.mrf.mxu0
      %2025 = vmatprep.mubr.f32.mxu0 0.0
      %2026 = vmatmul.mubr.f32.gmra.mxu0 %v1865
      %v2027 = vpop.f32.mrf.mxu0
      %v2028 = vadd.f32 0.0, %v2027
      %v2029 = vpop.f32.mrf.mxu0
      %2030 = vmatprep.mubr.f32.mxu0 0.0
      %2031 = vmatmul.mubr.f32.gmra.mxu0 %v1866
      %v2032 = vpop.f32.mrf.mxu0
      %v2033 = vadd.f32 0.0, %v2032
      %v2034 = vpop.f32.mrf.mxu0
      %2035 = vmatprep.mubr.f32.mxu0 0.0
      %2036 = vmatmul.mubr.f32.gmra.mxu0 %v1867
      %v2037 = vpop.f32.mrf.mxu0
      %v2038 = vadd.f32 0.0, %v2037
      %v2039 = vpop.f32.mrf.mxu0
      %2040 = vmatprep.mubr.f32.mxu0 0.0
      %2041 = vmatmul.mubr.f32.gmra.mxu0 %v1868
      %v2042 = vpop.f32.mrf.mxu0
      %v2043 = vadd.f32 0.0, %v2042
      %v2044 = vpop.f32.mrf.mxu0
      %2045 = vmatprep.mubr.f32.mxu0 0.0
      %2046 = vmatmul.mubr.f32.gmra.mxu0 %v1869
      %v2047 = vpop.f32.mrf.mxu0
      %v2048 = vadd.f32 0.0, %v2047
      %v2049 = vpop.f32.mrf.mxu0
      %2050 = vmatprep.mubr.f32.mxu0 0.0
      %2051 = vmatmul.mubr.f32.gmra.mxu0 %v1870
      %v2052 = vpop.f32.mrf.mxu0
      %v2053 = vadd.f32 0.0, %v2052
      %v2054 = vpop.f32.mrf.mxu0
      %2055 = vmatprep.mubr.f32.mxu0 0.0
      %2056 = vmatmul.mubr.f32.gmra.mxu0 %v1871
      %v2057 = vpop.f32.mrf.mxu0
      %v2058 = vadd.f32 0.0, %v2057
      %v2059 = vpop.f32.mrf.mxu0
      %2060 = vmatprep.mubr.f32.mxu0 0.0
      %2061 = vmatmul.mubr.f32.gmra.mxu0 %v1872
      %v2062 = vpop.f32.mrf.mxu0
      %v2063 = vadd.f32 0.0, %v2062
      %v2064 = vpop.f32.mrf.mxu0
      %2065 = vmatprep.mubr.f32.mxu0 0.0
      %2066 = vmatmul.mubr.f32.gmra.mxu0 %v1873
      %v2067 = vpop.f32.mrf.mxu0
      %v2068 = vadd.f32 0.0, %v2067
      %v2069 = vpop.f32.mrf.mxu0
      %2070 = vmatprep.mubr.f32.mxu0 0.0
      %2071 = vmatmul.mubr.f32.gmra.mxu0 %v1874
      %v2072 = vpop.f32.mrf.mxu0
      %v2073 = vadd.f32 0.0, %v2072
      %v2074 = vpop.f32.mrf.mxu0
      %2075 = vmatprep.mubr.f32.mxu0 0.0
      %2076 = vmatmul.mubr.f32.gmra.mxu0 %v1875
      %v2077 = vpop.f32.mrf.mxu0
      %v2078 = vadd.f32 0.0, %v2077
      %v2079 = vpop.f32.mrf.mxu0
      %2080 = vmatprep.mubr.f32.mxu0 0.0
      %2081 = vmatmul.mubr.f32.gmra.mxu0 %v1876
      %v2082 = vpop.f32.mrf.mxu0
      %v2083 = vadd.f32 0.0, %v2082
      %v2084 = vpop.f32.mrf.mxu0
      %2085 = vmatprep.mubr.f32.mxu0 0.0
      %2086 = vmatmul.mubr.f32.gmra.mxu0 %v1877
      %v2087 = vpop.f32.mrf.mxu0
      %v2088 = vadd.f32 0.0, %v2087
      %v2089 = vpop.f32.mrf.mxu0
      %2090 = vmatprep.mubr.f32.mxu0 0.0
      %2091 = vmatmul.mubr.f32.gmra.mxu0 %v1878
      %v2092 = vpop.f32.mrf.mxu0
      %v2093 = vadd.f32 0.0, %v2092
      %v2094 = vpop.f32.mrf.mxu0
      %2095 = vmatprep.mubr.f32.mxu0 0.0
      %2096 = vmatmul.mubr.f32.gmra.mxu0 %v1879
      %v2097 = vpop.f32.mrf.mxu0
      %v2098 = vadd.f32 0.0, %v2097
      %v2099 = vpop.f32.mrf.mxu0
      %2100 = vmatprep.mubr.f32.mxu0 0.0
      %2101 = vmatmul.mubr.f32.gmra.mxu0 %v1880
      %v2102 = vpop.f32.mrf.mxu0
      %v2103 = vadd.f32 0.0, %v2102
      %v2104 = vpop.f32.mrf.mxu0
      %2105 = vmatprep.mubr.f32.mxu0 0.0
      %2106 = vmatmul.mubr.f32.gmra.mxu0 %v1881
      %v2107 = vpop.f32.mrf.mxu0
      %v2108 = vadd.f32 0.0, %v2107
      %v2109 = vpop.f32.mrf.mxu0
      %2110 = vmatprep.mubr.f32.mxu0 0.0
      %2111 = vmatmul.mubr.f32.gmra.mxu0 %v1882
      %v2112 = vpop.f32.mrf.mxu0
      %v2113 = vadd.f32 0.0, %v2112
      %v2114 = vpop.f32.mrf.mxu0
      %2115 = vmatprep.mubr.f32.mxu0 0.0
      %2116 = vmatmul.mubr.f32.gmra.mxu0 %v1883
      %v2117 = vpop.f32.mrf.mxu0
      %v2118 = vadd.f32 0.0, %v2117
      %v2119 = vpop.f32.mrf.mxu0
      %2120 = vmatprep.mubr.f32.mxu0 0.0
      %2121 = vmatmul.mubr.f32.gmra.mxu0 %v1884
      %v2122 = vpop.f32.mrf.mxu0
      %v2123 = vadd.f32 0.0, %v2122
      %v2124 = vpop.f32.mrf.mxu0
      %2125 = vdwg.mxu0
      %2126 = vst.msk [vmem:[%s145] sm:$0xff] %vm179, %v1968
      %2127 = vst.msk [vmem:[%s145 + $0x8] sm:$0xff] %vm179, %v1973
      %2128 = vst.msk [vmem:[%s145 + $0x10] sm:$0xff] %vm179, %v1978
      %2129 = vst.msk [vmem:[%s145 + $0x18] sm:$0xff] %vm179, %v1983
      %2130 = vst.msk [vmem:[%s145 + $0x20] sm:$0xff] %vm179, %v1988
      %2131 = vst.msk [vmem:[%s145 + $0x28] sm:$0xff] %vm179, %v1993
      %2132 = vst.msk [vmem:[%s145 + $0x30] sm:$0xff] %vm179, %v1998
      %2133 = vst.msk [vmem:[%s145 + $0x38] sm:$0xff] %vm179, %v2003
      %2134 = vst.msk [vmem:[%s145 + $0x40] sm:$0xff] %vm179, %v2008
      %2135 = vst.msk [vmem:[%s145 + $0x48] sm:$0xff] %vm179, %v2013
      %2136 = vst.msk [vmem:[%s145 + $0x50] sm:$0xff] %vm179, %v2018
      %2137 = vst.msk [vmem:[%s145 + $0x58] sm:$0xff] %vm179, %v2023
      %2138 = vst.msk [vmem:[%s145 + $0x60] sm:$0xff] %vm179, %v2028
      %2139 = vst.msk [vmem:[%s145 + $0x68] sm:$0xff] %vm179, %v2033
      %2140 = vst.msk [vmem:[%s145 + $0x70] sm:$0xff] %vm179, %v2038
      %2141 = vst.msk [vmem:[%s145 + $0x78] sm:$0xff] %vm179, %v2043
      %2142 = vst.msk [vmem:[%s145 + $0x80] sm:$0xff] %vm179, %v2048
      %2143 = vst.msk [vmem:[%s145 + $0x88] sm:$0xff] %vm179, %v2053
      %2144 = vst.msk [vmem:[%s145 + $0x90] sm:$0xff] %vm179, %v2058
      %2145 = vst.msk [vmem:[%s145 + $0x98] sm:$0xff] %vm179, %v2063
      %2146 = vst.msk [vmem:[%s145 + $0xa0] sm:$0xff] %vm179, %v2068
      %2147 = vst.msk [vmem:[%s145 + $0xa8] sm:$0xff] %vm179, %v2073
      %2148 = vst.msk [vmem:[%s145 + $0xb0] sm:$0xff] %vm179, %v2078
      %2149 = vst.msk [vmem:[%s145 + $0xb8] sm:$0xff] %vm179, %v2083
      %2150 = vst.msk [vmem:[%s145 + $0xc0] sm:$0xff] %vm179, %v2088
      %2151 = vst.msk [vmem:[%s145 + $0xc8] sm:$0xff] %vm179, %v2093
      %2152 = vst.msk [vmem:[%s145 + $0xd0] sm:$0xff] %vm179, %v2098
      %2153 = vst.msk [vmem:[%s145 + $0xd8] sm:$0xff] %vm179, %v2103
      %2154 = vst.msk [vmem:[%s145 + $0xe0] sm:$0xff] %vm179, %v2108
      %2155 = vst.msk [vmem:[%s145 + $0xe8] sm:$0xff] %vm179, %v2113
      %2156 = vst.msk [vmem:[%s145 + $0xf0] sm:$0xff] %vm179, %v2118
      %2157 = vst.msk [vmem:[%s145 + $0xf8] sm:$0xff] %vm179, %v2123
      %s2158 = smul.u32 32, %s13
      %p2159 = scmp.lt.s32.totalorder %s2158, 63
      %s2160 = scalar_select %p2159, %s2158, 63
      %s2161 = smul.addr %s2160, 8
      %s2162 = scalar_lea.vmem %s2, %s2161
      // Predicated region
      $region29: #{autoencoder_forward.1} parent=27 // pred_check
        %p2163 = pneg %p78
      $region30: #{autoencoder_forward.1} parent=27 // pred_check_branch
        %2165 = sbr.rel (%p2163) target = $region32
      $region31: #{autoencoder_forward.1} parent=27 // pred_region
        %s2166 = smul.u32 32, %s13
      $region32: #{autoencoder_forward.1} parent=27 // pred_fallthru
        _
    $region28: #{autoencoder_forward.1} parent=5 // pred_fallthru
      _
    %p2167 = scmp.le.s32.totalorder 2, %s8
    // Predicated region
    $region33: #{autoencoder_forward.1} parent=5 // pred_check
      %p2168 = pneg %p2167
    $region34: #{autoencoder_forward.1} parent=5 // pred_check_branch
      %2170 = sbr.rel (%p2168) target = $region36
    $region35: #{autoencoder_forward.1} parent=5 // pred_region
      %s2171 = ssub.s32 %s8, 2
      // Predicated region
      $region37: #{autoencoder_forward.1} parent=35 // pred_check
        %p2172 = pneg %p84
      $region38: #{autoencoder_forward.1} parent=35 // pred_check_branch
        %2174 = sbr.rel (%p2172) target = $region40
      $region39: #{autoencoder_forward.1} parent=35 // pred_region
        %s2175 = smul.u32 32, %s14
        %p2176 = scmp.lt.s32.totalorder %s2175, 63
        %s2177 = scalar_select %p2176, %s2175, 63
        %s2178 = smul.addr %s2177, 8
        %s2179 = scalar_lea.vmem %s2, %s2178
      $region40: #{autoencoder_forward.1} parent=35 // pred_fallthru
        _
    $region36: #{autoencoder_forward.1} parent=5 // pred_fallthru
      _
  $region6: #{autoencoder_forward.1} parent=0 // loop_footer
    %s12 = sadd.s32 1, %s8
  $region7: #{autoencoder_forward.1} parent=0 // loop_footer_branch
    %7 = sbr.rel target = $region3
  $region8: #{autoencoder_forward.1} parent=0 // loop_exit
    _

</llo_original>
